<compile_context>
chip_gen: v5e
topology: v5e:2x2
jax: 0.10.0
libtpu: 0.0.40
codegen_flags: <defaults>
</compile_context>

<pallas_src>
import math

import numpy as np
import jax
import jax.numpy as jnp
from jax import lax
from jax.experimental import pallas as pl
from jax.experimental.pallas import tpu as pltpu

POOL_SIZES = (1, 2, 3, 6)
S_TOTAL = sum(s * s for s in POOL_SIZES)       # 50 pooled positions
S_PAD = 64                                     # padded pooled axis (clean bf16 sublane tiles)
BN_EPS = 1e-5


# ----------------------------------------------------------------------------
# Host-side helpers: exact linear operators for adaptive pooling / bilinear up
# ----------------------------------------------------------------------------
def _adaptive_pool_matrix(s, n):
    """(s, n) averaging matrix reproducing nn.AdaptiveAvgPool bin boundaries."""
    P = np.zeros((s, n), np.float32)
    for i in range(s):
        a = (i * n) // s
        b = math.ceil((i + 1) * n / s)
        P[i, a:b] = 1.0 / (b - a)
    return P


def _bilinear_up_matrix(n_out, s):
    """(n_out, s) 1-D bilinear interpolation matrix, align_corners=True."""
    U = np.zeros((n_out, s), np.float32)
    if s == 1:
        U[:, 0] = 1.0
        return U
    for i in range(n_out):
        src = i * (s - 1) / (n_out - 1) if n_out > 1 else 0.0
        j0 = min(int(math.floor(src)), s - 2)
        w = src - j0
        U[i, j0] += 1.0 - w
        U[i, j0 + 1] += w
    return U


def _fold_bn(w, gamma, beta, mean, var):
    """Fold inference-mode BatchNorm into a bias-free 1x1 conv (C_in, C_out)."""
    scale = gamma / jnp.sqrt(var + BN_EPS)
    return w * scale[None, :], (beta - mean * scale)[None, :]


def _pick_tile(hw):
    """Return (spatial tile multiple of 128, HW padded to a multiple of it)."""
    for t in (2048, 1024, 512, 256, 128):
        if hw % t == 0:
            return t, hw
    base = 512 if hw >= 512 else 128
    hw_pad = ((hw + base - 1) // base) * base
    return base, hw_pad


# ----------------------------------------------------------------------------
# Fused kernel:  pooled branches (G) + identity conv + upsample + ReLU
#   grid = (N, T); x / P / U / weights are VMEM-resident, output lane-dense.
# ----------------------------------------------------------------------------
def _make_ppm_kernel(recompute_g):
    def kernel(x_ref, p_ref, u_ref, wbT_ref, bb_ref, mask_ref,
               wcT_ref, wcxT_ref, bcat_ref, o_ref, g_ref):
        t = pl.program_id(1)
        tile = o_ref.shape[-1]

        def compute_g():
            # pooled features of all four pyramid branches in one matmul:
            # (C, HW) x (S_PAD, HW) contracted on the lane dim -> (C, S_PAD)
            pooled = lax.dot_general(
                x_ref[...], p_ref[...],
                dimension_numbers=(((1,), (1,)), ((), ())),
                preferred_element_type=jnp.float32)
            # all four branch 1x1 convs (folded BN) in one stacked matmul
            f = jnp.dot(wbT_ref[...], pooled.astype(jnp.bfloat16),
                        preferred_element_type=jnp.float32) + bb_ref[...]
            # ReLU first, then zero cross-branch terms / bias leakage
            f = jnp.maximum(f, 0.0) * mask_ref[...]
            # branch slices of the final (folded) 1x1 conv: G = wc^T @ f
            g_ref[...] = jnp.dot(wcT_ref[...], f.astype(jnp.bfloat16),
                                 preferred_element_type=jnp.float32
                                 ).astype(g_ref.dtype)

        if recompute_g:
            # self-contained steps -> spatial axis can be "parallel" (v7x N=1)
            compute_g()
        else:
            # once per image; spatial axis is "arbitrary"
            pl.when(t == 0)(compute_g)

        # per-tile output: relu(Wx^T x + G U + b), lane-dense (outC, tile)
        col = pl.multiple_of(t * tile, 128)
        x_t = x_ref[:, pl.ds(col, tile)]                 # (C, tile), resident bf16
        u_t = u_ref[:, pl.ds(col, tile)]                 # (S_PAD, tile), resident bf16
        acc = jnp.dot(wcxT_ref[...], x_t, preferred_element_type=jnp.float32)
        acc = acc + jnp.dot(g_ref[...], u_t, preferred_element_type=jnp.float32)
        acc = acc + bcat_ref[...]
        o_ref[...] = jnp.maximum(acc, 0.0).astype(o_ref.dtype)

    return kernel


# ----------------------------------------------------------------------------
# Wrapper
# ----------------------------------------------------------------------------
def ppm_pallas(x_nchw, params, out_dtype=jnp.float32):
    N, C, H, W = x_nchw.shape
    HW = H * W
    Ct = C // 4
    outC = params["wcat"].shape[1]
    tile, HW_pad = _pick_tile(HW)
    T = HW_pad // tile

    # ---- fold BN (inference running stats) into the 1x1 convs ---------------
    wcat_f, bcat_f = _fold_bn(params["wcat"], params["cat_gamma"],
                              params["cat_beta"], params["cat_mean"],
                              params["cat_var"])
    wcxT = wcat_f[:C].T.astype(jnp.bfloat16)               # (outC, C)   identity slice
    wcT = wcat_f[C:].T.astype(jnp.bfloat16)                # (outC, 4Ct) branch slices
    bcatT = bcat_f.T.astype(jnp.float32)                   # (outC, 1)

    # ---- dense pooling / upsampling operators, lane-dense + zero-padded -----
    P_all = np.zeros((S_PAD, HW_pad), np.float32)
    U_all = np.zeros((S_PAD, HW_pad), np.float32)
    mask_np = np.zeros((4 * Ct, S_PAD), np.float32)
    wbT_list, bb_list = [], []
    off = 0
    for k, s in enumerate(POOL_SIZES):
        P2d = np.kron(_adaptive_pool_matrix(s, H), _adaptive_pool_matrix(s, W))  # (s*s, HW)
        U2d = np.kron(_bilinear_up_matrix(H, s), _bilinear_up_matrix(W, s))      # (HW, s*s)
        P_all[off:off + s * s, :HW] = P2d
        U_all[off:off + s * s, :HW] = U2d.T
        wb_f, bb_f = _fold_bn(params[f"w{k+1}"], params[f"g{k+1}"],
                              params[f"b{k+1}"], params[f"m{k+1}"],
                              params[f"v{k+1}"])
        wbT_list.append(wb_f.T)                            # (Ct, C)
        bb_list.append(bb_f.reshape(-1))                   # (Ct,)
        mask_np[k * Ct:(k + 1) * Ct, off:off + s * s] = 1.0
        off += s * s

    P_all = jnp.asarray(P_all, jnp.bfloat16)               # (S_PAD, HW_pad)
    U_all = jnp.asarray(U_all, jnp.bfloat16)               # (S_PAD, HW_pad)
    maskj = jnp.asarray(mask_np)                           # (4Ct, S_PAD) f32
    wbT = jnp.concatenate(wbT_list, 0).astype(jnp.bfloat16)            # (4Ct, C)
    bb = jnp.concatenate(bb_list).reshape(4 * Ct, 1).astype(jnp.float32)

    # ---- x: bf16 stream, NCHW-native, zero-padded spatial columns -----------
    x_flat = x_nchw.reshape(N, C, HW).astype(jnp.bfloat16)
    if HW_pad != HW:
        x_flat = jnp.pad(x_flat, ((0, 0), (0, 0), (0, HW_pad - HW)))

    # v7x N=1: make every step self-contained so the tile axis can be split
    # across both TensorCores; otherwise compute G once per image.
    recompute_g = (N == 1)
    semantics = ("parallel", "parallel") if recompute_g else ("parallel", "arbitrary")

    out_itemsize = jnp.dtype(out_dtype).itemsize
    step_bytes = (2 * C * HW_pad * 2                        # resident x (double-buffered)
                  + 2 * outC * tile * out_itemsize          # output tile (double-buffered)
                  + 2 * 2 * S_PAD * HW_pad * 2              # resident P + U
                  + outC * S_PAD * 2                        # G scratch
                  + 8 * (4 * Ct * (C + 1 + S_PAD) + outC * (4 * Ct + C + 1))
                  + 4 * (C + outC) * max(S_PAD, tile))      # f32 intermediates
    vmem_limit = int(min(max(2 * step_bytes + (4 << 20), 16 << 20), 64 << 20))
    # TODO(synk): for HW too large for per-image VMEM residency, fall back to a
    # streamed two-pass (pooled reduction + upsample) variant.

    out_flat = pl.pallas_call(
        _make_ppm_kernel(recompute_g),
        out_shape=jax.ShapeDtypeStruct((N, outC, HW_pad), out_dtype),
        grid=(N, T),
        in_specs=[
            pl.BlockSpec((None, C, HW_pad), lambda n, t: (n, 0, 0)),   # x, resident per image
            pl.BlockSpec((S_PAD, HW_pad), lambda n, t: (0, 0)),        # pooling op, resident
            pl.BlockSpec((S_PAD, HW_pad), lambda n, t: (0, 0)),        # upsample op, resident
            pl.BlockSpec((4 * Ct, C), lambda n, t: (0, 0)),            # stacked branch convs
            pl.BlockSpec((4 * Ct, 1), lambda n, t: (0, 0)),            # stacked branch biases
            pl.BlockSpec((4 * Ct, S_PAD), lambda n, t: (0, 0)),        # block-diag mask
            pl.BlockSpec((outC, 4 * Ct), lambda n, t: (0, 0)),         # final conv (branches)
            pl.BlockSpec((outC, C), lambda n, t: (0, 0)),              # final conv (identity)
            pl.BlockSpec((outC, 1), lambda n, t: (0, 0)),              # folded BN bias
        ],
        out_specs=pl.BlockSpec((None, outC, tile), lambda n, t: (n, 0, t)),
        scratch_shapes=[pltpu.VMEM((outC, S_PAD), jnp.bfloat16)],      # G
        compiler_params=pltpu.CompilerParams(
            dimension_semantics=semantics, vmem_limit_bytes=vmem_limit),
    )(x_flat, P_all, U_all, wbT, bb, maskj, wcT, wcxT, bcatT)

    return out_flat[:, :, :HW].reshape(N, outC, H, W)


# ----------------------------------------------------------------------------
# Pure-JAX reference (independent formulation, PyTorch semantics)
# ----------------------------------------------------------------------------
def _adaptive_avg_pool_ref(x_hwc, s):
    H, W, _ = x_hwc.shape
    rows = []
    for i in range(s):
        h0, h1 = (i * H) // s, math.ceil((i + 1) * H / s)
        cols = []
        for j in range(s):
            w0, w1 = (j * W) // s, math.ceil((j + 1) * W / s)
            cols.append(jnp.mean(x_hwc[h0:h1, w0:w1, :], axis=(0, 1)))
        rows.append(jnp.stack(cols, 0))
    return jnp.stack(rows, 0)


def _bilinear_up_ref(f_ssc, H, W):
    s, _, C = f_ssc.shape
    if s == 1:
        return jnp.broadcast_to(f_ssc[0, 0][None, None], (H, W, C))

    def coords(n_out, n_in):
        src = jnp.arange(n_out, dtype=jnp.float32) * (n_in - 1) / (n_out - 1)
        i0 = jnp.clip(jnp.floor(src).astype(jnp.int32), 0, n_in - 2)
        return i0, src - i0.astype(jnp.float32)

    hi, hw = coords(H, s)
    wi, ww = coords(W, s)
    fh = f_ssc[hi] * (1 - hw)[:, None, None] + f_ssc[hi + 1] * hw[:, None, None]
    return fh[:, wi] * (1 - ww)[None, :, None] + fh[:, wi + 1] * ww[None, :, None]


def ppm_reference(x_nchw, params):
    N, C, H, W = x_nchw.shape
    x = jnp.transpose(x_nchw, (0, 2, 3, 1)).astype(jnp.float32)
    feats = [x]
    for k, s in enumerate(POOL_SIZES):
        wb, bb = _fold_bn(params[f"w{k+1}"], params[f"g{k+1}"], params[f"b{k+1}"],
                          params[f"m{k+1}"], params[f"v{k+1}"])
        pooled = jax.vmap(lambda xi: _adaptive_avg_pool_ref(xi, s))(x)
        f = jnp.maximum(jnp.einsum('nijc,cd->nijd', pooled, wb,
                                   precision="highest") + bb[0], 0.0)
        feats.append(jax.vmap(lambda fi: _bilinear_up_ref(fi, H, W))(f))
    cat = jnp.concatenate(feats, axis=-1)
    wc, bc = _fold_bn(params["wcat"], params["cat_gamma"], params["cat_beta"],
                      params["cat_mean"], params["cat_var"])
    out = jnp.maximum(jnp.einsum('nhwc,cd->nhwd', cat, wc,
                                 precision="highest") + bc[0], 0.0)
    return jnp.transpose(out, (0, 3, 1, 2))


# ----------------------------------------------------------------------------
# Deterministic synthetic parameters
# ----------------------------------------------------------------------------
def make_params(key, C, outC):
    Ct = C // 4
    keys = jax.random.split(key, 5)
    p = {}
    for k in range(4):
        bk = jax.random.split(keys[k], 5)
        p[f"w{k+1}"] = 0.2 * jax.random.normal(bk[0], (C, Ct), jnp.float32)
        p[f"g{k+1}"] = 0.8 + 0.4 * jax.random.uniform(bk[1], (Ct,), jnp.float32)
        p[f"b{k+1}"] = 0.05 * jax.random.normal(bk[2], (Ct,), jnp.float32)
        p[f"m{k+1}"] = 0.1 * jax.random.normal(bk[3], (Ct,), jnp.float32)
        p[f"v{k+1}"] = 0.5 + jax.random.uniform(bk[4], (Ct,), jnp.float32)
    ck = jax.random.split(keys[4], 5)
    p["wcat"] = 0.2 * jax.random.normal(ck[0], (2 * C, outC), jnp.float32)
    p["cat_gamma"] = 0.8 + 0.4 * jax.random.uniform(ck[1], (outC,), jnp.float32)
    p["cat_beta"] = 0.05 * jax.random.normal(ck[2], (outC,), jnp.float32)
    p["cat_mean"] = 0.1 * jax.random.normal(ck[3], (outC,), jnp.float32)
    p["cat_var"] = 0.5 + jax.random.uniform(ck[4], (outC,), jnp.float32)
    return p


if __name__ == "__main__":
    key = jax.random.PRNGKey(0)
    kx1, kp1, kx2, kp2 = jax.random.split(key, 4)

    # Case 1: inChannels=16 -> tempChannel=4; H*W=1536 -> tile 512, 3 tiles/image
    N, C, H, W, outC = 2, 16, 32, 48, 32
    x = jax.random.normal(kx1, (N, C, H, W), jnp.float32)
    params = make_params(kp1, C, outC)
    out = jax.block_until_ready(ppm_pallas(x, params))
    ref = jax.block_until_ready(ppm_reference(x, params))
    assert out.shape == (N, outC, H, W)
    np.testing.assert_allclose(np.asarray(out), np.asarray(ref),
                               rtol=3e-2, atol=3e-2)

    # Case 2: ragged H*W=378 (zero-padded to 384) and N=1 (recompute-G / parallel path)
    N2, C2, H2, W2, outC2 = 1, 16, 18, 21, 24
    x2 = jax.random.normal(kx2, (N2, C2, H2, W2), jnp.float32)
    params2 = make_params(kp2, C2, outC2)
    out2 = jax.block_until_ready(ppm_pallas(x2, params2))
    ref2 = jax.block_until_ready(ppm_reference(x2, params2))
    assert out2.shape == (N2, outC2, H2, W2)
    np.testing.assert_allclose(np.asarray(out2), np.asarray(ref2),
                               rtol=3e-2, atol=3e-2)

    print("KERNEL_OK")
</pallas_src>

<mosaic_0001>
module attributes {stable_mosaic.version = 11 : i64} {
  func.func @kernel(%arg0: i32, %arg1: i32, %arg2: memref<1x16x1536xbf16, #tpu.memory_space<vmem>>, %arg3: memref<64x1536xbf16, #tpu.memory_space<vmem>>, %arg4: memref<64x1536xbf16, #tpu.memory_space<vmem>>, %arg5: memref<16x16xbf16, #tpu.memory_space<vmem>>, %arg6: memref<16x1xf32, #tpu.memory_space<vmem>>, %arg7: memref<16x64xf32, #tpu.memory_space<vmem>>, %arg8: memref<32x16xbf16, #tpu.memory_space<vmem>>, %arg9: memref<32x16xbf16, #tpu.memory_space<vmem>>, %arg10: memref<32x1xf32, #tpu.memory_space<vmem>>, %arg11: memref<1x32x512xf32, #tpu.memory_space<vmem>>, %arg12: memref<32x64xbf16, #tpu.memory_space<vmem>>) attributes {dimension_semantics = [#tpu.dimension_semantics<parallel>, #tpu.dimension_semantics<arbitrary>], iteration_bounds = array<i64: 2, 3>, scalar_prefetch = 0 : i64, scratch_operands = 1 : i64, tpu.core_type = #tpu.core_type<tc>, window_params = [{transform_indices = @transform_0, window_bounds = array<i64: 1, 16, 1536>}, {pipeline_mode = #tpu.pipeline_mode<synchronous>, transform_indices = @transform_1, window_bounds = array<i64: 64, 1536>}, {pipeline_mode = #tpu.pipeline_mode<synchronous>, transform_indices = @transform_2, window_bounds = array<i64: 64, 1536>}, {pipeline_mode = #tpu.pipeline_mode<synchronous>, transform_indices = @transform_3, window_bounds = array<i64: 16, 16>}, {pipeline_mode = #tpu.pipeline_mode<synchronous>, transform_indices = @transform_4, window_bounds = array<i64: 16, 1>}, {pipeline_mode = #tpu.pipeline_mode<synchronous>, transform_indices = @transform_5, window_bounds = array<i64: 16, 64>}, {pipeline_mode = #tpu.pipeline_mode<synchronous>, transform_indices = @transform_6, window_bounds = array<i64: 32, 16>}, {pipeline_mode = #tpu.pipeline_mode<synchronous>, transform_indices = @transform_7, window_bounds = array<i64: 32, 16>}, {pipeline_mode = #tpu.pipeline_mode<synchronous>, transform_indices = @transform_8, window_bounds = array<i64: 32, 1>}, {transform_indices = @transform_9, window_bounds = array<i64: 1, 32, 512>}]} {
    %c0_i32 = arith.constant 0 : i32
    %0 = arith.cmpi eq, %arg1, %c0_i32 : i32
    %1 = arith.extui %0 : i1 to i32
    %c0_i32_0 = arith.constant 0 : i32
    %2 = arith.cmpi ne, %1, %c0_i32_0 : i32
    scf.if %2 {
      %c0_14 = arith.constant 0 : index
      %c0_15 = arith.constant 0 : index
      %c0_16 = arith.constant 0 : index
      %23 = vector.load %arg2[%c0_14, %c0_15, %c0_16] : memref<1x16x1536xbf16, #tpu.memory_space<vmem>>, vector<1x16x1536xbf16>
      %24 = vector.shape_cast %23 : vector<1x16x1536xbf16> to vector<16x1536xbf16>
      %c0_17 = arith.constant 0 : index
      %c0_18 = arith.constant 0 : index
      %25 = vector.load %arg3[%c0_17, %c0_18] : memref<64x1536xbf16, #tpu.memory_space<vmem>>, vector<64x1536xbf16>
      %cst_19 = arith.constant dense<0.000000e+00> : vector<16x64xf32>
      %26 = tpu.matmul %24, %25, %cst_19 {dimension_numbers = #tpu.dot_dimension_numbers<[1], [1], [0], [0], [0, 0, 1, 0], [], []>} : vector<16x1536xbf16>, vector<64x1536xbf16>, vector<16x64xf32> -> vector<16x64xf32>
      %c0_20 = arith.constant 0 : index
      %c0_21 = arith.constant 0 : index
      %27 = vector.load %arg5[%c0_20, %c0_21] : memref<16x16xbf16, #tpu.memory_space<vmem>>, vector<16x16xbf16>
      %28 = arith.truncf %26 : vector<16x64xf32> to vector<16x64xbf16>
      %cst_22 = arith.constant dense<0.000000e+00> : vector<16x64xf32>
      %29 = tpu.matmul %27, %28, %cst_22 {dimension_numbers = #tpu.dot_dimension_numbers<[1], [0], [0], [1], [0, 0, 1, 1], [], []>} : vector<16x16xbf16>, vector<16x64xbf16>, vector<16x64xf32> -> vector<16x64xf32>
      %c0_23 = arith.constant 0 : index
      %c0_24 = arith.constant 0 : index
      %30 = vector.load %arg6[%c0_23, %c0_24] : memref<16x1xf32, #tpu.memory_space<vmem>>, vector<16x1xf32>
      %31 = vector.broadcast %30 : vector<16x1xf32> to vector<16x64xf32>
      %32 = arith.addf %29, %31 : vector<16x64xf32>
      %cst_25 = arith.constant 0.000000e+00 : f32
      %33 = vector.broadcast %cst_25 : f32 to vector<16x64xf32>
      %34 = arith.maximumf %32, %33 : vector<16x64xf32>
      %c0_26 = arith.constant 0 : index
      %c0_27 = arith.constant 0 : index
      %35 = vector.load %arg7[%c0_26, %c0_27] : memref<16x64xf32, #tpu.memory_space<vmem>>, vector<16x64xf32>
      %36 = arith.mulf %34, %35 : vector<16x64xf32>
      %c0_28 = arith.constant 0 : index
      %c0_29 = arith.constant 0 : index
      %37 = vector.load %arg8[%c0_28, %c0_29] : memref<32x16xbf16, #tpu.memory_space<vmem>>, vector<32x16xbf16>
      %38 = arith.truncf %36 : vector<16x64xf32> to vector<16x64xbf16>
      %cst_30 = arith.constant dense<0.000000e+00> : vector<32x64xf32>
      %39 = tpu.matmul %37, %38, %cst_30 {dimension_numbers = #tpu.dot_dimension_numbers<[1], [0], [0], [1], [0, 0, 1, 1], [], []>} : vector<32x16xbf16>, vector<16x64xbf16>, vector<32x64xf32> -> vector<32x64xf32>
      %40 = arith.truncf %39 : vector<32x64xf32> to vector<32x64xbf16>
      %c0_31 = arith.constant 0 : index
      %c0_32 = arith.constant 0 : index
      %41 = vector.load %arg12[%c0_31, %c0_32] : memref<32x64xbf16, #tpu.memory_space<vmem>>, vector<32x64xbf16>
      tpu.vector_store %arg12[%c0_31, %c0_32], %40 {strides = array<i32>} : memref<32x64xbf16, #tpu.memory_space<vmem>>, vector<32x64xbf16>,
    } else {
    }
    %c512_i32 = arith.constant 512 : i32
    %3 = arith.muli %arg1, %c512_i32 : i32
    %4 = tpu.assume_multiple %3, 128 : i32
    %c0 = arith.constant 0 : index
    %c0_1 = arith.constant 0 : index
    %5 = arith.index_cast %4 : i32 to index
    %6 = vector.load %arg2[%c0, %c0_1, %5] : memref<1x16x1536xbf16, #tpu.memory_space<vmem>>, vector<1x16x512xbf16>
    %7 = vector.shape_cast %6 : vector<1x16x512xbf16> to vector<16x512xbf16>
    %c0_2 = arith.constant 0 : index
    %8 = arith.index_cast %4 : i32 to index
    %9 = vector.load %arg4[%c0_2, %8] : memref<64x1536xbf16, #tpu.memory_space<vmem>>, vector<64x512xbf16>
    %c0_3 = arith.constant 0 : index
    %c0_4 = arith.constant 0 : index
    %10 = vector.load %arg9[%c0_3, %c0_4] : memref<32x16xbf16, #tpu.memory_space<vmem>>, vector<32x16xbf16>
    %cst = arith.constant dense<0.000000e+00> : vector<32x512xf32>
    %11 = tpu.matmul %10, %7, %cst {dimension_numbers = #tpu.dot_dimension_numbers<[1], [0], [0], [1], [0, 0, 1, 1], [], []>} : vector<32x16xbf16>, vector<16x512xbf16>, vector<32x512xf32> -> vector<32x512xf32>
    %c0_5 = arith.constant 0 : index
    %c0_6 = arith.constant 0 : index
    %12 = vector.load %arg12[%c0_5, %c0_6] : memref<32x64xbf16, #tpu.memory_space<vmem>>, vector<32x64xbf16>
    %cst_7 = arith.constant dense<0.000000e+00> : vector<32x512xf32>
    %13 = tpu.matmul %12, %9, %cst_7 {dimension_numbers = #tpu.dot_dimension_numbers<[1], [0], [0], [1], [0, 0, 1, 1], [], []>} : vector<32x64xbf16>, vector<64x512xbf16>, vector<32x512xf32> -> vector<32x512xf32>
    %14 = arith.addf %11, %13 : vector<32x512xf32>
    %c0_8 = arith.constant 0 : index
    %c0_9 = arith.constant 0 : index
    %15 = vector.load %arg10[%c0_8, %c0_9] : memref<32x1xf32, #tpu.memory_space<vmem>>, vector<32x1xf32>
    %16 = vector.broadcast %15 : vector<32x1xf32> to vector<32x512xf32>
    %17 = arith.addf %14, %16 : vector<32x512xf32>
    %cst_10 = arith.constant 0.000000e+00 : f32
    %18 = vector.broadcast %cst_10 : f32 to vector<32x512xf32>
    %19 = arith.maximumf %17, %18 : vector<32x512xf32>
    %c0_11 = arith.constant 0 : index
    %c0_12 = arith.constant 0 : index
    %c0_13 = arith.constant 0 : index
    %20 = vector.load %arg11[%c0_11, %c0_12, %c0_13] : memref<1x32x512xf32, #tpu.memory_space<vmem>>, vector<1x32x512xf32>
    %21 = vector.shape_cast %20 : vector<1x32x512xf32> to vector<32x512xf32>
    %22 = vector.shape_cast %19 : vector<32x512xf32> to vector<1x32x512xf32>
    tpu.vector_store %arg11[%c0_11, %c0_12, %c0_13], %22 {strides = array<i32>} : memref<1x32x512xf32, #tpu.memory_space<vmem>>, vector<1x32x512xf32>,
    return
  }
  func.func @transform_0(%arg0: i32, %arg1: i32) -> (i32, i32, i32) {
    %c0_i32 = arith.constant 0 : i32
    %c0_i32_0 = arith.constant 0 : i32
    %c0_i32_1 = arith.constant 0 : i32
    return %arg0, %c0_i32, %c0_i32_0 : i32, i32, i32
  }
  func.func @transform_1(%arg0: i32, %arg1: i32) -> (i32, i32) {
    %c0_i32 = arith.constant 0 : i32
    %c0_i32_0 = arith.constant 0 : i32
    %c0_i32_1 = arith.constant 0 : i32
    return %c0_i32, %c0_i32_0 : i32, i32
  }
  func.func @transform_2(%arg0: i32, %arg1: i32) -> (i32, i32) {
    %c0_i32 = arith.constant 0 : i32
    %c0_i32_0 = arith.constant 0 : i32
    %c0_i32_1 = arith.constant 0 : i32
    return %c0_i32, %c0_i32_0 : i32, i32
  }
  func.func @transform_3(%arg0: i32, %arg1: i32) -> (i32, i32) {
    %c0_i32 = arith.constant 0 : i32
    %c0_i32_0 = arith.constant 0 : i32
    %c0_i32_1 = arith.constant 0 : i32
    return %c0_i32, %c0_i32_0 : i32, i32
  }
  func.func @transform_4(%arg0: i32, %arg1: i32) -> (i32, i32) {
    %c0_i32 = arith.constant 0 : i32
    %c0_i32_0 = arith.constant 0 : i32
    %c0_i32_1 = arith.constant 0 : i32
    return %c0_i32, %c0_i32_0 : i32, i32
  }
  func.func @transform_5(%arg0: i32, %arg1: i32) -> (i32, i32) {
    %c0_i32 = arith.constant 0 : i32
    %c0_i32_0 = arith.constant 0 : i32
    %c0_i32_1 = arith.constant 0 : i32
    return %c0_i32, %c0_i32_0 : i32, i32
  }
  func.func @transform_6(%arg0: i32, %arg1: i32) -> (i32, i32) {
    %c0_i32 = arith.constant 0 : i32
    %c0_i32_0 = arith.constant 0 : i32
    %c0_i32_1 = arith.constant 0 : i32
    return %c0_i32, %c0_i32_0 : i32, i32
  }
  func.func @transform_7(%arg0: i32, %arg1: i32) -> (i32, i32) {
    %c0_i32 = arith.constant 0 : i32
    %c0_i32_0 = arith.constant 0 : i32
    %c0_i32_1 = arith.constant 0 : i32
    return %c0_i32, %c0_i32_0 : i32, i32
  }
  func.func @transform_8(%arg0: i32, %arg1: i32) -> (i32, i32) {
    %c0_i32 = arith.constant 0 : i32
    %c0_i32_0 = arith.constant 0 : i32
    %c0_i32_1 = arith.constant 0 : i32
    return %c0_i32, %c0_i32_0 : i32, i32
  }
  func.func @transform_9(%arg0: i32, %arg1: i32) -> (i32, i32, i32) {
    %c0_i32 = arith.constant 0 : i32
    %c0_i32_0 = arith.constant 0 : i32
    return %arg0, %c0_i32, %arg1 : i32, i32, i32
  }
}

</mosaic_0001>

<llo_original>
// kernel: tpu_custom_call.1
$region0: #{tpu_custom_call.1}
  #allocation0 [shape = 'u32[]', space=smem, size = 0x4, offset = 0x4, fixed_abs, tag = 'smem constant byte address 0x4 - core index']
  #allocation1 [shape = 'u32[72,128]{1,0:T(1,128)}', space=vmem, size = 0x9000, scoped, tag = 'internal scratch']
  #allocation2 [shape = 'bf16[32,64]{1,0:T(8,128)(2,1)}', space=vmem, size = 0x2000, scoped, tag = 'scratch operand']
  %s0 = inlined_call_operand.hbm [shape: bf16[2,16,1536], index: 0, kind: input, shape index: {}]
  %s1 = inlined_call_operand.hbm [shape: bf16[64,1536], index: 1, kind: input, shape index: {}]
  %s2 = inlined_call_operand.hbm [shape: bf16[64,1536], index: 2, kind: input, shape index: {}]
  %s3 = inlined_call_operand.vmem [shape: bf16[16,16], index: 3, kind: input, shape index: {}]
  %s4 = inlined_call_operand.vmem [shape: f32[16,1], index: 4, kind: input, shape index: {}]
  %s5 = inlined_call_operand.vmem [shape: f32[16,64], index: 5, kind: input, shape index: {}]
  %s6 = inlined_call_operand.vmem [shape: bf16[32,16], index: 6, kind: input, shape index: {}]
  %s7 = inlined_call_operand.vmem [shape: bf16[32,16], index: 7, kind: input, shape index: {}]
  %s8 = inlined_call_operand.vmem [shape: f32[32,1], index: 8, kind: input, shape index: {}]
  %s9 = inlined_call_operand.hbm [shape: f32[2,32,1536], index: 9, kind: output, shape index: {}]
  %s10 = sld [smem:[#allocation0]]
  $region85: #{tpu_custom_call.1} parent=0
    _
  %s12 = ssub.s32 1, %s10
  %s13 = scalar_select 0, %s12, %s10
  $region1: #{tpu_custom_call.1} parent=0
    #allocation3 [shape = 'u8[98304]{0}', space=vmem, size = 0x18000, scoped, tag = 'input window, operand 0']
    #allocation4 [shape = 's32[2]{0}', space=sflag, size = 0x8, scoped, tag = 'scoped memory for tpu_custom_call.1']
    #allocation5 [shape = 's32[2]{0}', space=sflag, size = 0x8, scoped, tag = 'scoped memory for tpu_custom_call.1']
    #allocation6 [shape = 'u8[196608]{0}', space=vmem, size = 0x30000, scoped, tag = 'input window, operand 1, single buffered']
    #allocation7 [shape = 's32[1]{0}', space=sflag, size = 0x4, scoped, tag = 'scoped memory for tpu_custom_call.1']
    #allocation8 [shape = 'u8[196608]{0}', space=vmem, size = 0x30000, scoped, tag = 'input window, operand 2, single buffered']
    #allocation9 [shape = 'u8[131072]{0}', space=vmem, size = 0x20000, scoped, tag = 'output window, operand 0']
    %14 = vsyncpa [#allocation4], 0
    %s15 = scalar_lea.sflag [#allocation4], 1
    %16 = vsyncpa %s15, 0
    %17 = vsyncpa [#allocation7], 0
    %18 = vsyncpa [#allocation5], 0
    %s19 = scalar_lea.sflag [#allocation5], 1
    %20 = vsyncpa %s19, 0
    loop: start=0, step=1, limit=8
    $region2: #{tpu_custom_call.1} parent=1 // loop_pre_header
      _
    $region3: #{tpu_custom_call.1} parent=1 // loop_header
      %s22 = sphi 0, %s26
      %p23 = scmp.ge.s32.totalorder %s22, 8
      %s29 = sphi 0, %s41
      %s30 = sphi 0, %s37
      %s31 = sphi 0, %s29
      %s32 = sphi 0, %s30
      %s33 = sphi 0, %s31
      %s34 = sphi 0, %s32
      %s44 = sphi 0, %s46
      %s47 = sphi 0, %s44
      %s48 = sphi 0, %s47
      %s64 = sphi 0, %s48
      %s68 = sphi 0, %s68
      %s70 = sphi 0, %s68
      %s71 = sphi 0, %s70
      %s85 = sphi 0, %s71
      %s89 = sphi 0, %s89
      %s91 = sphi 0, %s89
      %s92 = sphi 0, %s91
      %s106 = sphi 0, %s92
      %s110 = sphi 0, %s110
      %s112 = sphi 0, %s110
      %s113 = sphi 0, %s112
      %s127 = sphi 0, %s113
      %s131 = sphi 0, %s131
      %s133 = sphi 0, %s131
      %s134 = sphi 0, %s133
      %s148 = sphi 0, %s134
      %s152 = sphi 0, %s152
      %s154 = sphi 0, %s152
      %s155 = sphi 0, %s154
      %s169 = sphi 0, %s155
      %s173 = sphi 0, %s173
      %s175 = sphi 0, %s173
      %s176 = sphi 0, %s175
      %s190 = sphi 0, %s176
      %s194 = sphi 0, %s194
      %s196 = sphi 0, %s194
      %s197 = sphi 0, %s196
      %s211 = sphi 0, %s197
      %s215 = sphi 0, %s215
      %s217 = sphi 0, %s215
      %s218 = sphi 0, %s217
      %s232 = sphi 0, %s218
      %s240 = sphi 0, %s242
      %s243 = sphi 0, %s240
      %s244 = sphi 0, %s243
      %s260 = sphi 0, %s244
    $region4: #{tpu_custom_call.1} parent=1 // loop_header_branch
      %25 = sbr.rel (%p23) target = $region8
    $region5: #{tpu_custom_call.1} parent=1 // loop_body
      %s27 = ssub.s32 %s22, 1
      %s28 = ssub.s32 %s22, 2
      %s35 = sadd.s32 1, %s30
      %p36 = scmp.ge.s32.totalorder %s35, 3
      %s37 = scalar_select %p36, 0, %s35
      %s38 = sadd.s32 1, %s29
      %s39 = scalar_select %p36, %s38, %s29
      %p40 = scmp.ge.s32.totalorder %s39, 2
      %s41 = scalar_select %p40, 0, %s39
      %s42 = ssub.s32 %s29, %s41
      %p43 = scmp.eq.s32.totalorder %s42, 0
      %s45 = sadd.s32 %s44, 1
      %s46 = scalar_select %p43, %s44, %s45
      %p49 = pneg %p43
      %p50 = scmp.eq.s32.totalorder %s22, 5
      %p51 = por %p49, %p50
      %p52 = scmp.ne.s32.totalorder %s44, %s47
      %p53 = scmp.eq.s32.totalorder %s22, 0
      %p54 = por %p52, %p53
      %p55 = scmp.ne.s32.totalorder %s44, %s47
      %p56 = scmp.eq.s32.totalorder %s27, 5
      %p57 = por %p55, %p56
      %p58 = scmp.ne.s32.totalorder %s47, %s48
      %p59 = scmp.eq.s32.totalorder %s27, 0
      %p60 = por %p58, %p59
      %p61 = scmp.ne.s32.totalorder %s47, %s48
      %p62 = scmp.eq.s32.totalorder %s28, 5
      %p63 = por %p61, %p62
      %p65 = scmp.ne.s32.totalorder %s48, %s64
      %p66 = scmp.eq.s32.totalorder %s28, 0
      %p67 = por %p65, %p66
      %s69 = sadd.s32 %s68, 1
      %p72 = scmp.eq.s32.totalorder %s22, 5
      %p73 = scmp.ne.s32.totalorder %s68, %s70
      %p74 = scmp.eq.s32.totalorder %s22, 0
      %p75 = por %p73, %p74
      %p76 = scmp.ne.s32.totalorder %s68, %s70
      %p77 = scmp.eq.s32.totalorder %s27, 5
      %p78 = por %p76, %p77
      %p79 = scmp.ne.s32.totalorder %s70, %s71
      %p80 = scmp.eq.s32.totalorder %s27, 0
      %p81 = por %p79, %p80
      %p82 = scmp.ne.s32.totalorder %s70, %s71
      %p83 = scmp.eq.s32.totalorder %s28, 5
      %p84 = por %p82, %p83
      %p86 = scmp.ne.s32.totalorder %s71, %s85
      %p87 = scmp.eq.s32.totalorder %s28, 0
      %p88 = por %p86, %p87
      %s90 = sadd.s32 %s89, 1
      %p93 = scmp.eq.s32.totalorder %s22, 5
      %p94 = scmp.ne.s32.totalorder %s89, %s91
      %p95 = scmp.eq.s32.totalorder %s22, 0
      %p96 = por %p94, %p95
      %p97 = scmp.ne.s32.totalorder %s89, %s91
      %p98 = scmp.eq.s32.totalorder %s27, 5
      %p99 = por %p97, %p98
      %p100 = scmp.ne.s32.totalorder %s91, %s92
      %p101 = scmp.eq.s32.totalorder %s27, 0
      %p102 = por %p100, %p101
      %p103 = scmp.ne.s32.totalorder %s91, %s92
      %p104 = scmp.eq.s32.totalorder %s28, 5
      %p105 = por %p103, %p104
      %p107 = scmp.ne.s32.totalorder %s92, %s106
      %p108 = scmp.eq.s32.totalorder %s28, 0
      %p109 = por %p107, %p108
      %s111 = sadd.s32 %s110, 1
      %p114 = scmp.eq.s32.totalorder %s22, 5
      %p115 = scmp.ne.s32.totalorder %s110, %s112
      %p116 = scmp.eq.s32.totalorder %s22, 0
      %p117 = por %p115, %p116
      %p118 = scmp.ne.s32.totalorder %s110, %s112
      %p119 = scmp.eq.s32.totalorder %s27, 5
      %p120 = por %p118, %p119
      %p121 = scmp.ne.s32.totalorder %s112, %s113
      %p122 = scmp.eq.s32.totalorder %s27, 0
      %p123 = por %p121, %p122
      %p124 = scmp.ne.s32.totalorder %s112, %s113
      %p125 = scmp.eq.s32.totalorder %s28, 5
      %p126 = por %p124, %p125
      %p128 = scmp.ne.s32.totalorder %s113, %s127
      %p129 = scmp.eq.s32.totalorder %s28, 0
      %p130 = por %p128, %p129
      %s132 = sadd.s32 %s131, 1
      %p135 = scmp.eq.s32.totalorder %s22, 5
      %p136 = scmp.ne.s32.totalorder %s131, %s133
      %p137 = scmp.eq.s32.totalorder %s22, 0
      %p138 = por %p136, %p137
      %p139 = scmp.ne.s32.totalorder %s131, %s133
      %p140 = scmp.eq.s32.totalorder %s27, 5
      %p141 = por %p139, %p140
      %p142 = scmp.ne.s32.totalorder %s133, %s134
      %p143 = scmp.eq.s32.totalorder %s27, 0
      %p144 = por %p142, %p143
      %p145 = scmp.ne.s32.totalorder %s133, %s134
      %p146 = scmp.eq.s32.totalorder %s28, 5
      %p147 = por %p145, %p146
      %p149 = scmp.ne.s32.totalorder %s134, %s148
      %p150 = scmp.eq.s32.totalorder %s28, 0
      %p151 = por %p149, %p150
      %s153 = sadd.s32 %s152, 1
      %p156 = scmp.eq.s32.totalorder %s22, 5
      %p157 = scmp.ne.s32.totalorder %s152, %s154
      %p158 = scmp.eq.s32.totalorder %s22, 0
      %p159 = por %p157, %p158
      %p160 = scmp.ne.s32.totalorder %s152, %s154
      %p161 = scmp.eq.s32.totalorder %s27, 5
      %p162 = por %p160, %p161
      %p163 = scmp.ne.s32.totalorder %s154, %s155
      %p164 = scmp.eq.s32.totalorder %s27, 0
      %p165 = por %p163, %p164
      %p166 = scmp.ne.s32.totalorder %s154, %s155
      %p167 = scmp.eq.s32.totalorder %s28, 5
      %p168 = por %p166, %p167
      %p170 = scmp.ne.s32.totalorder %s155, %s169
      %p171 = scmp.eq.s32.totalorder %s28, 0
      %p172 = por %p170, %p171
      %s174 = sadd.s32 %s173, 1
      %p177 = scmp.eq.s32.totalorder %s22, 5
      %p178 = scmp.ne.s32.totalorder %s173, %s175
      %p179 = scmp.eq.s32.totalorder %s22, 0
      %p180 = por %p178, %p179
      %p181 = scmp.ne.s32.totalorder %s173, %s175
      %p182 = scmp.eq.s32.totalorder %s27, 5
      %p183 = por %p181, %p182
      %p184 = scmp.ne.s32.totalorder %s175, %s176
      %p185 = scmp.eq.s32.totalorder %s27, 0
      %p186 = por %p184, %p185
      %p187 = scmp.ne.s32.totalorder %s175, %s176
      %p188 = scmp.eq.s32.totalorder %s28, 5
      %p189 = por %p187, %p188
      %p191 = scmp.ne.s32.totalorder %s176, %s190
      %p192 = scmp.eq.s32.totalorder %s28, 0
      %p193 = por %p191, %p192
      %s195 = sadd.s32 %s194, 1
      %p198 = scmp.eq.s32.totalorder %s22, 5
      %p199 = scmp.ne.s32.totalorder %s194, %s196
      %p200 = scmp.eq.s32.totalorder %s22, 0
      %p201 = por %p199, %p200
      %p202 = scmp.ne.s32.totalorder %s194, %s196
      %p203 = scmp.eq.s32.totalorder %s27, 5
      %p204 = por %p202, %p203
      %p205 = scmp.ne.s32.totalorder %s196, %s197
      %p206 = scmp.eq.s32.totalorder %s27, 0
      %p207 = por %p205, %p206
      %p208 = scmp.ne.s32.totalorder %s196, %s197
      %p209 = scmp.eq.s32.totalorder %s28, 5
      %p210 = por %p208, %p209
      %p212 = scmp.ne.s32.totalorder %s197, %s211
      %p213 = scmp.eq.s32.totalorder %s28, 0
      %p214 = por %p212, %p213
      %s216 = sadd.s32 %s215, 1
      %p219 = scmp.eq.s32.totalorder %s22, 5
      %p220 = scmp.ne.s32.totalorder %s215, %s217
      %p221 = scmp.eq.s32.totalorder %s22, 0
      %p222 = por %p220, %p221
      %p223 = scmp.ne.s32.totalorder %s215, %s217
      %p224 = scmp.eq.s32.totalorder %s27, 5
      %p225 = por %p223, %p224
      %p226 = scmp.ne.s32.totalorder %s217, %s218
      %p227 = scmp.eq.s32.totalorder %s27, 0
      %p228 = por %p226, %p227
      %p229 = scmp.ne.s32.totalorder %s217, %s218
      %p230 = scmp.eq.s32.totalorder %s28, 5
      %p231 = por %p229, %p230
      %p233 = scmp.ne.s32.totalorder %s218, %s232
      %p234 = scmp.eq.s32.totalorder %s28, 0
      %p235 = por %p233, %p234
      %s236 = ssub.s32 %s29, %s41
      %s237 = ssub.s32 %s30, %s37
      %s238 = sor.u32 %s236, %s237
      %p239 = scmp.eq.s32.totalorder %s238, 0
      %s241 = sadd.s32 %s240, 1
      %s242 = scalar_select %p239, %s240, %s241
      %p245 = pneg %p239
      %p246 = scmp.eq.s32.totalorder %s22, 5
      %p247 = por %p245, %p246
      %p248 = scmp.ne.s32.totalorder %s240, %s243
      %p249 = scmp.eq.s32.totalorder %s22, 0
      %p250 = por %p248, %p249
      %p251 = scmp.ne.s32.totalorder %s240, %s243
      %p252 = scmp.eq.s32.totalorder %s27, 5
      %p253 = por %p251, %p252
      %p254 = scmp.ne.s32.totalorder %s243, %s244
      %p255 = scmp.eq.s32.totalorder %s27, 0
      %p256 = por %p254, %p255
      %p257 = scmp.ne.s32.totalorder %s243, %s244
      %p258 = scmp.eq.s32.totalorder %s28, 5
      %p259 = por %p257, %p258
      %p261 = scmp.ne.s32.totalorder %s244, %s260
      %p262 = scmp.eq.s32.totalorder %s28, 0
      %p263 = por %p261, %p262
      %p264 = scmp.le.s32.totalorder 1, %s22
      %p265 = scmp.lt.s32.totalorder %s22, 7
      %p266 = pnand %p264, %p265
      %p267 = pneg %p266
      // Predicated region
      $region9: #{tpu_custom_call.1} parent=5 // pred_check
        _
      $region10: #{tpu_custom_call.1} parent=5 // pred_check_branch
        %269 = sbr.rel (%p266) target = $region12
      $region11: #{tpu_custom_call.1} parent=5 // pred_region
        %s270 = ssub.s32 %s22, 1
        // Predicated region
        $region13: #{tpu_custom_call.1} parent=11 // pred_check
          %p271 = pneg %p81
        $region14: #{tpu_custom_call.1} parent=11 // pred_check_branch
          %273 = sbr.rel (%p271) target = $region16
        $region15: #{tpu_custom_call.1} parent=11 // pred_region
          %275 = vsyncadd [#allocation7], 0
          %s276 = sshll.u32 %s1, 4
          %s277 = int_to_ptr.hbm [resolvable:$true] %s276
          %s278 = sshll.u32 [#allocation6], 4
          %s279 = int_to_ptr.vmem [resolvable:$true] %s278
          %284 = dma.hbm_to_vmem [thread:$0]  %s277, 6144, %s279, [#allocation7], 768, 768, 48
        $region16: #{tpu_custom_call.1} parent=11 // pred_fallthru
          _
        // Predicated region
        $region17: #{tpu_custom_call.1} parent=11 // pred_check
          %p285 = pneg %p102
        $region18: #{tpu_custom_call.1} parent=11 // pred_check_branch
          %287 = sbr.rel (%p285) target = $region20
        $region19: #{tpu_custom_call.1} parent=11 // pred_region
          %289 = vsyncadd [#allocation7], 0
          %s290 = sshll.u32 %s2, 4
          %s291 = int_to_ptr.hbm [resolvable:$true] %s290
          %s292 = sshll.u32 [#allocation8], 4
          %s293 = int_to_ptr.vmem [resolvable:$true] %s292
          %298 = dma.hbm_to_vmem [thread:$0]  %s291, 6144, %s293, [#allocation7], 768, 768, 48
        $region20: #{tpu_custom_call.1} parent=11 // pred_fallthru
          _
        // Predicated region
        $region21: #{tpu_custom_call.1} parent=11 // pred_check
          %p299 = pneg %p123
        $region22: #{tpu_custom_call.1} parent=11 // pred_check_branch
          %301 = sbr.rel (%p299) target = $region24
        $region23: #{tpu_custom_call.1} parent=11 // pred_region
          _
        $region24: #{tpu_custom_call.1} parent=11 // pred_fallthru
          _
        // Predicated region
        $region25: #{tpu_custom_call.1} parent=11 // pred_check
          %p302 = pneg %p144
        $region26: #{tpu_custom_call.1} parent=11 // pred_check_branch
          %304 = sbr.rel (%p302) target = $region28
        $region27: #{tpu_custom_call.1} parent=11 // pred_region
          _
        $region28: #{tpu_custom_call.1} parent=11 // pred_fallthru
          _
        // Predicated region
        $region29: #{tpu_custom_call.1} parent=11 // pred_check
          %p305 = pneg %p165
        $region30: #{tpu_custom_call.1} parent=11 // pred_check_branch
          %307 = sbr.rel (%p305) target = $region32
        $region31: #{tpu_custom_call.1} parent=11 // pred_region
          _
        $region32: #{tpu_custom_call.1} parent=11 // pred_fallthru
          _
        // Predicated region
        $region33: #{tpu_custom_call.1} parent=11 // pred_check
          %p308 = pneg %p186
        $region34: #{tpu_custom_call.1} parent=11 // pred_check_branch
          %310 = sbr.rel (%p308) target = $region36
        $region35: #{tpu_custom_call.1} parent=11 // pred_region
          _
        $region36: #{tpu_custom_call.1} parent=11 // pred_fallthru
          _
        // Predicated region
        $region37: #{tpu_custom_call.1} parent=11 // pred_check
          %p311 = pneg %p207
        $region38: #{tpu_custom_call.1} parent=11 // pred_check_branch
          %313 = sbr.rel (%p311) target = $region40
        $region39: #{tpu_custom_call.1} parent=11 // pred_region
          _
        $region40: #{tpu_custom_call.1} parent=11 // pred_fallthru
          _
        // Predicated region
        $region41: #{tpu_custom_call.1} parent=11 // pred_check
          %p314 = pneg %p228
        $region42: #{tpu_custom_call.1} parent=11 // pred_check_branch
          %316 = sbr.rel (%p314) target = $region44
        $region43: #{tpu_custom_call.1} parent=11 // pred_region
          _
        $region44: #{tpu_custom_call.1} parent=11 // pred_fallthru
          _
      $region12: #{tpu_custom_call.1} parent=5 // pred_fallthru
        _
      %p317 = scmp.lt.s32.totalorder %s22, 6
      // Predicated region
      $region45: #{tpu_custom_call.1} parent=5 // pred_check
        %p318 = pneg %p317
      $region46: #{tpu_custom_call.1} parent=5 // pred_check_branch
        %320 = sbr.rel (%p318) target = $region48
      $region47: #{tpu_custom_call.1} parent=5 // pred_region
        // Predicated region
        $region49: #{tpu_custom_call.1} parent=47 // pred_check
          %p321 = pneg %p54
        $region50: #{tpu_custom_call.1} parent=47 // pred_check_branch
          %323 = sbr.rel (%p321) target = $region52
        $region51: #{tpu_custom_call.1} parent=47 // pred_region
          %s324 = sand.u32 %s44, 1
          %s325 = scalar_lea.sflag [#allocation4], %s324
          %s326 = sand.u32 %s44, 1
          %s327 = smul.addr %s326, 96
          %s328 = scalar_lea.vmem [#allocation3], %s327
          %330 = vsyncadd %s325, 0
          %s331 = smul.addr %s29, 24
          %s332 = smul.addr %s331, 4
          %s333 = scalar_lea.hbm %s0, %s332
          %s334 = sshll.u32 %s333, 4
          %s335 = int_to_ptr.hbm [resolvable:$true] %s334
          %s336 = sshll.u32 %s328, 4
          %s337 = int_to_ptr.vmem [resolvable:$true] %s336
          %342 = dma.hbm_to_vmem [thread:$0]  %s335, 1536, %s337, %s325, 768, 768, 48
        $region52: #{tpu_custom_call.1} parent=47 // pred_fallthru
          _
      $region48: #{tpu_custom_call.1} parent=5 // pred_fallthru
        _
      %p343 = scmp.le.s32.totalorder 1, %s22
      %p344 = scmp.lt.s32.totalorder %s22, 7
      %p345 = pnand %p343, %p344
      %p346 = pneg %p345
      // Predicated region
      $region53: #{tpu_custom_call.1} parent=5 // pred_check
        _
      $region54: #{tpu_custom_call.1} parent=5 // pred_check_branch
        %348 = sbr.rel (%p345) target = $region56
      $region55: #{tpu_custom_call.1} parent=5 // pred_region
        %s349 = ssub.s32 %s22, 1
        %s350 = sand.u32 %s47, 1
        %s351 = scalar_lea.sflag [#allocation4], %s350
        %s352 = sand.u32 %s47, 1
        %s353 = smul.addr %s352, 96
        %s354 = scalar_lea.vmem [#allocation3], %s353
        // Predicated region
        $region57: #{tpu_custom_call.1} parent=55 // pred_check
          %p355 = pneg %p60
        $region58: #{tpu_custom_call.1} parent=55 // pred_check_branch
          %357 = sbr.rel (%p355) target = $region60
        $region59: #{tpu_custom_call.1} parent=55 // pred_region
          %359 = dma.done %s351, 1536
        $region60: #{tpu_custom_call.1} parent=55 // pred_fallthru
          _
        // Predicated region
        $region61: #{tpu_custom_call.1} parent=55 // pred_check
          %p360 = pneg %p81
        $region62: #{tpu_custom_call.1} parent=55 // pred_check_branch
          %362 = sbr.rel (%p360) target = $region64
        $region63: #{tpu_custom_call.1} parent=55 // pred_region
          %364 = dma.done [#allocation7], 6144
        $region64: #{tpu_custom_call.1} parent=55 // pred_fallthru
          _
        // Predicated region
        $region65: #{tpu_custom_call.1} parent=55 // pred_check
          %p365 = pneg %p102
        $region66: #{tpu_custom_call.1} parent=55 // pred_check_branch
          %367 = sbr.rel (%p365) target = $region68
        $region67: #{tpu_custom_call.1} parent=55 // pred_region
          %369 = dma.done [#allocation7], 6144
        $region68: #{tpu_custom_call.1} parent=55 // pred_fallthru
          _
        %s370 = sand.u32 %s47, 1
        %s371 = scalar_lea.sflag [#allocation4], %s370
        %s372 = sand.u32 %s47, 1
        %s373 = smul.addr %s372, 96
        %s374 = scalar_lea.vmem [#allocation3], %s373
        %p375 = pneg %p60
        %p376 = pneg %p57
        %p377 = pneg %p81
        %p378 = pneg %p78
        %p379 = pneg %p102
        %p380 = pneg %p99
        %p381 = pneg %p123
        %p382 = pneg %p120
        %p383 = pneg %p144
        %p384 = pneg %p141
        %p385 = pneg %p165
        %p386 = pneg %p162
        %p387 = pneg %p186
        %p388 = pneg %p183
        %p389 = pneg %p207
        %p390 = pneg %p204
        %p391 = pneg %p228
        %p392 = pneg %p225
        %p393 = pneg %p256
        %p394 = pneg %p253
        %s395 = sand.u32 %s243, 1
        %s396 = scalar_lea.sflag [#allocation5], %s395
        %s397 = sand.u32 %s243, 1
        %s398 = smul.addr %s397, 128
        %s399 = scalar_lea.vmem [#allocation9], %s398
        %s400 = smul.u32 4, %s32
        %p402 = scmp.eq.s32.totalorder %s32, 0
        // Predicated region
        $region69: #{tpu_custom_call.1} parent=55 // pred_check
          %p403 = pneg %p402
        $region70: #{tpu_custom_call.1} parent=55 // pred_check_branch
          %405 = sbr.rel (%p403) target = $region72
        $region71: #{tpu_custom_call.1} parent=55 // pred_region
          %v406 = vld [vmem:[%s354] sm:$0xff]
          %v407 = vld [vmem:[%s354 + $0x8] sm:$0xff]
          %v408 = vld [vmem:[%s354 + $0x10] sm:$0xff]
          %v409 = vld [vmem:[%s354 + $0x18] sm:$0xff]
          %v410 = vld [vmem:[%s354 + $0x20] sm:$0xff]
          %v411 = vld [vmem:[%s354 + $0x28] sm:$0xff]
          %v412 = vld [vmem:[%s354 + $0x30] sm:$0xff]
          %v413 = vld [vmem:[%s354 + $0x38] sm:$0xff]
          %v414 = vld [vmem:[%s354 + $0x40] sm:$0xff]
          %v415 = vld [vmem:[%s354 + $0x48] sm:$0xff]
          %v416 = vld [vmem:[%s354 + $0x50] sm:$0xff]
          %v417 = vld [vmem:[%s354 + $0x58] sm:$0xff]
          %v418 = vld [vmem:[#allocation6] sm:$0xff]
          %v419 = vld [vmem:[#allocation6 + $0x8] sm:$0xff]
          %v420 = vld [vmem:[#allocation6 + $0x10] sm:$0xff]
          %v421 = vld [vmem:[#allocation6 + $0x18] sm:$0xff]
          %v422 = vld [vmem:[#allocation6 + $0x20] sm:$0xff]
          %v423 = vld [vmem:[#allocation6 + $0x28] sm:$0xff]
          %v424 = vld [vmem:[#allocation6 + $0x30] sm:$0xff]
          %v425 = vld [vmem:[#allocation6 + $0x38] sm:$0xff]
          %v426 = vld [vmem:[#allocation6 + $0x40] sm:$0xff]
          %v427 = vld [vmem:[#allocation6 + $0x48] sm:$0xff]
          %v428 = vld [vmem:[#allocation6 + $0x50] sm:$0xff]
          %v429 = vld [vmem:[#allocation6 + $0x58] sm:$0xff]
          %v430 = vld [vmem:[#allocation6 + $0x60] sm:$0xff]
          %v431 = vld [vmem:[#allocation6 + $0x68] sm:$0xff]
          %v432 = vld [vmem:[#allocation6 + $0x70] sm:$0xff]
          %v433 = vld [vmem:[#allocation6 + $0x78] sm:$0xff]
          %v434 = vld [vmem:[#allocation6 + $0x80] sm:$0xff]
          %v435 = vld [vmem:[#allocation6 + $0x88] sm:$0xff]
          %v436 = vld [vmem:[#allocation6 + $0x90] sm:$0xff]
          %v437 = vld [vmem:[#allocation6 + $0x98] sm:$0xff]
          %v438 = vld [vmem:[#allocation6 + $0xa0] sm:$0xff]
          %v439 = vld [vmem:[#allocation6 + $0xa8] sm:$0xff]
          %v440 = vld [vmem:[#allocation6 + $0xb0] sm:$0xff]
          %v441 = vld [vmem:[#allocation6 + $0xb8] sm:$0xff]
          %v442 = vld [vmem:[#allocation6 + $0xc0] sm:$0xff]
          %v443 = vld [vmem:[#allocation6 + $0xc8] sm:$0xff]
          %v444 = vld [vmem:[#allocation6 + $0xd0] sm:$0xff]
          %v445 = vld [vmem:[#allocation6 + $0xd8] sm:$0xff]
          %v446 = vld [vmem:[#allocation6 + $0xe0] sm:$0xff]
          %v447 = vld [vmem:[#allocation6 + $0xe8] sm:$0xff]
          %v448 = vld [vmem:[#allocation6 + $0xf0] sm:$0xff]
          %v449 = vld [vmem:[#allocation6 + $0xf8] sm:$0xff]
          %v450 = vld [vmem:[#allocation6 + $0x100] sm:$0xff]
          %v451 = vld [vmem:[#allocation6 + $0x108] sm:$0xff]
          %v452 = vld [vmem:[#allocation6 + $0x110] sm:$0xff]
          %v453 = vld [vmem:[#allocation6 + $0x118] sm:$0xff]
          %v454 = vld [vmem:[#allocation6 + $0x120] sm:$0xff]
          %v455 = vld [vmem:[#allocation6 + $0x128] sm:$0xff]
          %v456 = vld [vmem:[#allocation6 + $0x130] sm:$0xff]
          %v457 = vld [vmem:[#allocation6 + $0x138] sm:$0xff]
          %v458 = vld [vmem:[#allocation6 + $0x140] sm:$0xff]
          %v459 = vld [vmem:[#allocation6 + $0x148] sm:$0xff]
          %v460 = vld [vmem:[#allocation6 + $0x150] sm:$0xff]
          %v461 = vld [vmem:[#allocation6 + $0x158] sm:$0xff]
          %v462 = vld [vmem:[#allocation6 + $0x160] sm:$0xff]
          %v463 = vld [vmem:[#allocation6 + $0x168] sm:$0xff]
          %v464 = vld [vmem:[#allocation6 + $0x170] sm:$0xff]
          %v465 = vld [vmem:[#allocation6 + $0x178] sm:$0xff]
          %v478 = vunpack.c.l.b16 %v406
          %v479 = vunpack.c.h.b16 %v406
          %v480 = vunpack.c.l.b16 %v407
          %v481 = vunpack.c.h.b16 %v407
          %v482 = vunpack.c.l.b16 %v408
          %v483 = vunpack.c.h.b16 %v408
          %v484 = vunpack.c.l.b16 %v409
          %v485 = vunpack.c.h.b16 %v409
          %v486 = vunpack.c.l.b16 %v410
          %v487 = vunpack.c.h.b16 %v410
          %v488 = vunpack.c.l.b16 %v411
          %v489 = vunpack.c.h.b16 %v411
          %v490 = vunpack.c.l.b16 %v412
          %v491 = vunpack.c.h.b16 %v412
          %v492 = vunpack.c.l.b16 %v413
          %v493 = vunpack.c.h.b16 %v413
          %v494 = vunpack.c.l.b16 %v414
          %v495 = vunpack.c.h.b16 %v414
          %v496 = vunpack.c.l.b16 %v415
          %v497 = vunpack.c.h.b16 %v415
          %v498 = vunpack.c.l.b16 %v416
          %v499 = vunpack.c.h.b16 %v416
          %v500 = vunpack.c.l.b16 %v417
          %v501 = vunpack.c.h.b16 %v417
          %v502 = vpack.c.b16 %v490, %v478
          %v503 = vpack.c.b16 %v491, %v479
          %v504 = vpack.c.b16 %v492, %v480
          %v505 = vpack.c.b16 %v493, %v481
          %v506 = vpack.c.b16 %v494, %v482
          %v507 = vpack.c.b16 %v495, %v483
          %v508 = vpack.c.b16 %v496, %v484
          %v509 = vpack.c.b16 %v497, %v485
          %v510 = vpack.c.b16 %v498, %v486
          %v511 = vpack.c.b16 %v499, %v487
          %v512 = vpack.c.b16 %v500, %v488
          %v513 = vpack.c.b16 %v501, %v489
          %v574 = vunpack.c.l.b16 %v418
          %v575 = vunpack.c.h.b16 %v418
          %v576 = vunpack.c.l.b16 %v419
          %v577 = vunpack.c.h.b16 %v419
          %v578 = vunpack.c.l.b16 %v420
          %v579 = vunpack.c.h.b16 %v420
          %v580 = vunpack.c.l.b16 %v421
          %v581 = vunpack.c.h.b16 %v421
          %v582 = vunpack.c.l.b16 %v422
          %v583 = vunpack.c.h.b16 %v422
          %v584 = vunpack.c.l.b16 %v423
          %v585 = vunpack.c.h.b16 %v423
          %v586 = vunpack.c.l.b16 %v424
          %v587 = vunpack.c.h.b16 %v424
          %v588 = vunpack.c.l.b16 %v425
          %v589 = vunpack.c.h.b16 %v425
          %v590 = vunpack.c.l.b16 %v426
          %v591 = vunpack.c.h.b16 %v426
          %v592 = vunpack.c.l.b16 %v427
          %v593 = vunpack.c.h.b16 %v427
          %v594 = vunpack.c.l.b16 %v428
          %v595 = vunpack.c.h.b16 %v428
          %v596 = vunpack.c.l.b16 %v429
          %v597 = vunpack.c.h.b16 %v429
          %v598 = vunpack.c.l.b16 %v430
          %v599 = vunpack.c.h.b16 %v430
          %v600 = vunpack.c.l.b16 %v431
          %v601 = vunpack.c.h.b16 %v431
          %v602 = vunpack.c.l.b16 %v432
          %v603 = vunpack.c.h.b16 %v432
          %v604 = vunpack.c.l.b16 %v433
          %v605 = vunpack.c.h.b16 %v433
          %v606 = vunpack.c.l.b16 %v434
          %v607 = vunpack.c.h.b16 %v434
          %v608 = vunpack.c.l.b16 %v435
          %v609 = vunpack.c.h.b16 %v435
          %v610 = vunpack.c.l.b16 %v436
          %v611 = vunpack.c.h.b16 %v436
          %v612 = vunpack.c.l.b16 %v437
          %v613 = vunpack.c.h.b16 %v437
          %v614 = vunpack.c.l.b16 %v438
          %v615 = vunpack.c.h.b16 %v438
          %v616 = vunpack.c.l.b16 %v439
          %v617 = vunpack.c.h.b16 %v439
          %v618 = vunpack.c.l.b16 %v440
          %v619 = vunpack.c.h.b16 %v440
          %v620 = vunpack.c.l.b16 %v441
          %v621 = vunpack.c.h.b16 %v441
          %v622 = vunpack.c.l.b16 %v442
          %v623 = vunpack.c.h.b16 %v442
          %v624 = vunpack.c.l.b16 %v443
          %v625 = vunpack.c.h.b16 %v443
          %v626 = vunpack.c.l.b16 %v444
          %v627 = vunpack.c.h.b16 %v444
          %v628 = vunpack.c.l.b16 %v445
          %v629 = vunpack.c.h.b16 %v445
          %v630 = vunpack.c.l.b16 %v446
          %v631 = vunpack.c.h.b16 %v446
          %v632 = vunpack.c.l.b16 %v447
          %v633 = vunpack.c.h.b16 %v447
          %v634 = vunpack.c.l.b16 %v448
          %v635 = vunpack.c.h.b16 %v448
          %v636 = vunpack.c.l.b16 %v449
          %v637 = vunpack.c.h.b16 %v449
          %v638 = vunpack.c.l.b16 %v450
          %v639 = vunpack.c.h.b16 %v450
          %v640 = vunpack.c.l.b16 %v451
          %v641 = vunpack.c.h.b16 %v451
          %v642 = vunpack.c.l.b16 %v452
          %v643 = vunpack.c.h.b16 %v452
          %v644 = vunpack.c.l.b16 %v453
          %v645 = vunpack.c.h.b16 %v453
          %v646 = vunpack.c.l.b16 %v454
          %v647 = vunpack.c.h.b16 %v454
          %v648 = vunpack.c.l.b16 %v455
          %v649 = vunpack.c.h.b16 %v455
          %v650 = vunpack.c.l.b16 %v456
          %v651 = vunpack.c.h.b16 %v456
          %v652 = vunpack.c.l.b16 %v457
          %v653 = vunpack.c.h.b16 %v457
          %v654 = vunpack.c.l.b16 %v458
          %v655 = vunpack.c.h.b16 %v458
          %v656 = vunpack.c.l.b16 %v459
          %v657 = vunpack.c.h.b16 %v459
          %v658 = vunpack.c.l.b16 %v460
          %v659 = vunpack.c.h.b16 %v460
          %v660 = vunpack.c.l.b16 %v461
          %v661 = vunpack.c.h.b16 %v461
          %v662 = vunpack.c.l.b16 %v462
          %v663 = vunpack.c.h.b16 %v462
          %v664 = vunpack.c.l.b16 %v463
          %v665 = vunpack.c.h.b16 %v463
          %v666 = vunpack.c.l.b16 %v464
          %v667 = vunpack.c.h.b16 %v464
          %v668 = vunpack.c.l.b16 %v465
          %v669 = vunpack.c.h.b16 %v465
          %v670 = vpack.c.b16 %v586, %v574
          %v671 = vpack.c.b16 %v587, %v575
          %v672 = vpack.c.b16 %v588, %v576
          %v673 = vpack.c.b16 %v589, %v577
          %v674 = vpack.c.b16 %v590, %v578
          %v675 = vpack.c.b16 %v591, %v579
          %v676 = vpack.c.b16 %v592, %v580
          %v677 = vpack.c.b16 %v593, %v581
          %v678 = vpack.c.b16 %v594, %v582
          %v679 = vpack.c.b16 %v595, %v583
          %v680 = vpack.c.b16 %v596, %v584
          %v681 = vpack.c.b16 %v597, %v585
          %v682 = vpack.c.b16 %v610, %v598
          %v683 = vpack.c.b16 %v611, %v599
          %v684 = vpack.c.b16 %v612, %v600
          %v685 = vpack.c.b16 %v613, %v601
          %v686 = vpack.c.b16 %v614, %v602
          %v687 = vpack.c.b16 %v615, %v603
          %v688 = vpack.c.b16 %v616, %v604
          %v689 = vpack.c.b16 %v617, %v605
          %v690 = vpack.c.b16 %v618, %v606
          %v691 = vpack.c.b16 %v619, %v607
          %v692 = vpack.c.b16 %v620, %v608
          %v693 = vpack.c.b16 %v621, %v609
          %v694 = vpack.c.b16 %v634, %v622
          %v695 = vpack.c.b16 %v635, %v623
          %v696 = vpack.c.b16 %v636, %v624
          %v697 = vpack.c.b16 %v637, %v625
          %v698 = vpack.c.b16 %v638, %v626
          %v699 = vpack.c.b16 %v639, %v627
          %v700 = vpack.c.b16 %v640, %v628
          %v701 = vpack.c.b16 %v641, %v629
          %v702 = vpack.c.b16 %v642, %v630
          %v703 = vpack.c.b16 %v643, %v631
          %v704 = vpack.c.b16 %v644, %v632
          %v705 = vpack.c.b16 %v645, %v633
          %v706 = vpack.c.b16 %v658, %v646
          %v707 = vpack.c.b16 %v659, %v647
          %v708 = vpack.c.b16 %v660, %v648
          %v709 = vpack.c.b16 %v661, %v649
          %v710 = vpack.c.b16 %v662, %v650
          %v711 = vpack.c.b16 %v663, %v651
          %v712 = vpack.c.b16 %v664, %v652
          %v713 = vpack.c.b16 %v665, %v653
          %v714 = vpack.c.b16 %v666, %v654
          %v715 = vpack.c.b16 %v667, %v655
          %v716 = vpack.c.b16 %v668, %v656
          %v717 = vpack.c.b16 %v669, %v657
          %766 = vmatpush.bf16.xpose.msra.mxu0 0
          %767 = vmatpush.bf16.xpose.msra.mxu0 0
          %768 = vmatpush.bf16.xpose.msra.mxu0 0
          %769 = vmatpush.bf16.xpose.msra.mxu0 0
          %770 = vmatpush.bf16.xpose.msra.mxu0 %v706
          %771 = vmatpush.bf16.xpose.msra.mxu0 %v694
          %772 = vmatpush.bf16.xpose.msra.mxu0 %v682
          %773 = vmatpush.bf16.xpose.msra.mxu0 %v670
          %774 = vmatmul.bf16.gmra.mxu0 %v502
          %v775 = vpop.f32.mrf.mxu0
          %v776 = vadd.f32 0.0, %v775
          %v777 = vpop.f32.mrf.mxu0
          %v778 = vadd.f32 0.0, %v777
          %779 = vdwg.mxu0
          %780 = vmatpush.bf16.xpose.msra.mxu0 0
          %781 = vmatpush.bf16.xpose.msra.mxu0 0
          %782 = vmatpush.bf16.xpose.msra.mxu0 0
          %783 = vmatpush.bf16.xpose.msra.mxu0 0
          %784 = vmatpush.bf16.xpose.msra.mxu0 %v707
          %785 = vmatpush.bf16.xpose.msra.mxu0 %v695
          %786 = vmatpush.bf16.xpose.msra.mxu0 %v683
          %787 = vmatpush.bf16.xpose.msra.mxu0 %v671
          %788 = vmatmul.bf16.gmra.mxu0 %v503
          %v789 = vpop.f32.mrf.mxu0
          %v790 = vadd.f32 %v776, %v789
          %v791 = vpop.f32.mrf.mxu0
          %v792 = vadd.f32 %v778, %v791
          %793 = vdwg.mxu0
          %794 = vmatpush.bf16.xpose.msra.mxu0 0
          %795 = vmatpush.bf16.xpose.msra.mxu0 0
          %796 = vmatpush.bf16.xpose.msra.mxu0 0
          %797 = vmatpush.bf16.xpose.msra.mxu0 0
          %798 = vmatpush.bf16.xpose.msra.mxu0 %v708
          %799 = vmatpush.bf16.xpose.msra.mxu0 %v696
          %800 = vmatpush.bf16.xpose.msra.mxu0 %v684
          %801 = vmatpush.bf16.xpose.msra.mxu0 %v672
          %802 = vmatmul.bf16.gmra.mxu0 %v504
          %v803 = vpop.f32.mrf.mxu0
          %v804 = vadd.f32 %v790, %v803
          %v805 = vpop.f32.mrf.mxu0
          %v806 = vadd.f32 %v792, %v805
          %807 = vdwg.mxu0
          %808 = vmatpush.bf16.xpose.msra.mxu0 0
          %809 = vmatpush.bf16.xpose.msra.mxu0 0
          %810 = vmatpush.bf16.xpose.msra.mxu0 0
          %811 = vmatpush.bf16.xpose.msra.mxu0 0
          %812 = vmatpush.bf16.xpose.msra.mxu0 %v709
          %813 = vmatpush.bf16.xpose.msra.mxu0 %v697
          %814 = vmatpush.bf16.xpose.msra.mxu0 %v685
          %815 = vmatpush.bf16.xpose.msra.mxu0 %v673
          %816 = vmatmul.bf16.gmra.mxu0 %v505
          %v817 = vpop.f32.mrf.mxu0
          %v818 = vadd.f32 %v804, %v817
          %v819 = vpop.f32.mrf.mxu0
          %v820 = vadd.f32 %v806, %v819
          %821 = vdwg.mxu0
          %822 = vmatpush.bf16.xpose.msra.mxu0 0
          %823 = vmatpush.bf16.xpose.msra.mxu0 0
          %824 = vmatpush.bf16.xpose.msra.mxu0 0
          %825 = vmatpush.bf16.xpose.msra.mxu0 0
          %826 = vmatpush.bf16.xpose.msra.mxu0 %v710
          %827 = vmatpush.bf16.xpose.msra.mxu0 %v698
          %828 = vmatpush.bf16.xpose.msra.mxu0 %v686
          %829 = vmatpush.bf16.xpose.msra.mxu0 %v674
          %830 = vmatmul.bf16.gmra.mxu0 %v506
          %v831 = vpop.f32.mrf.mxu0
          %v832 = vadd.f32 %v818, %v831
          %v833 = vpop.f32.mrf.mxu0
          %v834 = vadd.f32 %v820, %v833
          %835 = vdwg.mxu0
          %836 = vmatpush.bf16.xpose.msra.mxu0 0
          %837 = vmatpush.bf16.xpose.msra.mxu0 0
          %838 = vmatpush.bf16.xpose.msra.mxu0 0
          %839 = vmatpush.bf16.xpose.msra.mxu0 0
          %840 = vmatpush.bf16.xpose.msra.mxu0 %v711
          %841 = vmatpush.bf16.xpose.msra.mxu0 %v699
          %842 = vmatpush.bf16.xpose.msra.mxu0 %v687
          %843 = vmatpush.bf16.xpose.msra.mxu0 %v675
          %844 = vmatmul.bf16.gmra.mxu0 %v507
          %v845 = vpop.f32.mrf.mxu0
          %v846 = vadd.f32 %v832, %v845
          %v847 = vpop.f32.mrf.mxu0
          %v848 = vadd.f32 %v834, %v847
          %849 = vdwg.mxu0
          %850 = vmatpush.bf16.xpose.msra.mxu0 0
          %851 = vmatpush.bf16.xpose.msra.mxu0 0
          %852 = vmatpush.bf16.xpose.msra.mxu0 0
          %853 = vmatpush.bf16.xpose.msra.mxu0 0
          %854 = vmatpush.bf16.xpose.msra.mxu0 %v712
          %855 = vmatpush.bf16.xpose.msra.mxu0 %v700
          %856 = vmatpush.bf16.xpose.msra.mxu0 %v688
          %857 = vmatpush.bf16.xpose.msra.mxu0 %v676
          %858 = vmatmul.bf16.gmra.mxu0 %v508
          %v859 = vpop.f32.mrf.mxu0
          %v860 = vadd.f32 %v846, %v859
          %v861 = vpop.f32.mrf.mxu0
          %v862 = vadd.f32 %v848, %v861
          %863 = vdwg.mxu0
          %864 = vmatpush.bf16.xpose.msra.mxu0 0
          %865 = vmatpush.bf16.xpose.msra.mxu0 0
          %866 = vmatpush.bf16.xpose.msra.mxu0 0
          %867 = vmatpush.bf16.xpose.msra.mxu0 0
          %868 = vmatpush.bf16.xpose.msra.mxu0 %v713
          %869 = vmatpush.bf16.xpose.msra.mxu0 %v701
          %870 = vmatpush.bf16.xpose.msra.mxu0 %v689
          %871 = vmatpush.bf16.xpose.msra.mxu0 %v677
          %872 = vmatmul.bf16.gmra.mxu0 %v509
          %v873 = vpop.f32.mrf.mxu0
          %v874 = vadd.f32 %v860, %v873
          %v875 = vpop.f32.mrf.mxu0
          %v876 = vadd.f32 %v862, %v875
          %877 = vdwg.mxu0
          %878 = vmatpush.bf16.xpose.msra.mxu0 0
          %879 = vmatpush.bf16.xpose.msra.mxu0 0
          %880 = vmatpush.bf16.xpose.msra.mxu0 0
          %881 = vmatpush.bf16.xpose.msra.mxu0 0
          %882 = vmatpush.bf16.xpose.msra.mxu0 %v714
          %883 = vmatpush.bf16.xpose.msra.mxu0 %v702
          %884 = vmatpush.bf16.xpose.msra.mxu0 %v690
          %885 = vmatpush.bf16.xpose.msra.mxu0 %v678
          %886 = vmatmul.bf16.gmra.mxu0 %v510
          %v887 = vpop.f32.mrf.mxu0
          %v888 = vadd.f32 %v874, %v887
          %v889 = vpop.f32.mrf.mxu0
          %v890 = vadd.f32 %v876, %v889
          %891 = vdwg.mxu0
          %892 = vmatpush.bf16.xpose.msra.mxu0 0
          %893 = vmatpush.bf16.xpose.msra.mxu0 0
          %894 = vmatpush.bf16.xpose.msra.mxu0 0
          %895 = vmatpush.bf16.xpose.msra.mxu0 0
          %896 = vmatpush.bf16.xpose.msra.mxu0 %v715
          %897 = vmatpush.bf16.xpose.msra.mxu0 %v703
          %898 = vmatpush.bf16.xpose.msra.mxu0 %v691
          %899 = vmatpush.bf16.xpose.msra.mxu0 %v679
          %900 = vmatmul.bf16.gmra.mxu0 %v511
          %v901 = vpop.f32.mrf.mxu0
          %v902 = vadd.f32 %v888, %v901
          %v903 = vpop.f32.mrf.mxu0
          %v904 = vadd.f32 %v890, %v903
          %905 = vdwg.mxu0
          %906 = vmatpush.bf16.xpose.msra.mxu0 0
          %907 = vmatpush.bf16.xpose.msra.mxu0 0
          %908 = vmatpush.bf16.xpose.msra.mxu0 0
          %909 = vmatpush.bf16.xpose.msra.mxu0 0
          %910 = vmatpush.bf16.xpose.msra.mxu0 %v716
          %911 = vmatpush.bf16.xpose.msra.mxu0 %v704
          %912 = vmatpush.bf16.xpose.msra.mxu0 %v692
          %913 = vmatpush.bf16.xpose.msra.mxu0 %v680
          %914 = vmatmul.bf16.gmra.mxu0 %v512
          %v915 = vpop.f32.mrf.mxu0
          %v916 = vadd.f32 %v902, %v915
          %v917 = vpop.f32.mrf.mxu0
          %v918 = vadd.f32 %v904, %v917
          %919 = vdwg.mxu0
          %920 = vmatpush.bf16.xpose.msra.mxu0 0
          %921 = vmatpush.bf16.xpose.msra.mxu0 0
          %922 = vmatpush.bf16.xpose.msra.mxu0 0
          %923 = vmatpush.bf16.xpose.msra.mxu0 0
          %924 = vmatpush.bf16.xpose.msra.mxu0 %v717
          %925 = vmatpush.bf16.xpose.msra.mxu0 %v705
          %926 = vmatpush.bf16.xpose.msra.mxu0 %v693
          %927 = vmatpush.bf16.xpose.msra.mxu0 %v681
          %928 = vmatmul.bf16.gmra.mxu0 %v513
          %v929 = vpop.f32.mrf.mxu0
          %v930 = vadd.f32 %v916, %v929
          %v931 = vpop.f32.mrf.mxu0
          %v932 = vadd.f32 %v918, %v931
          %933 = vdwg.mxu0
          %v934 = vld [vmem:[%s3] sm:$0xf]
          %v935 = vld [vmem:[%s3 + $0x4] sm:$0xf]
          %v936 = vpack.c.bf16 %v932, %v930
          %v937 = vld [vmem:[%s4] sm:$0xff]
          %v938 = vld [vmem:[%s4 + $0x8] sm:$0xff]
          %940 = vset.pattern.permute.xlu0 0
          %941 = vperm.xlu0 %940, %v937
          %v942 = vpop.permute.xlu0 %941
          %945 = vset.pattern.permute.xlu0 0
          %946 = vperm.xlu0 %945, %v938
          %v947 = vpop.permute.xlu0 %946
          %v951 = vunpack.c.l.b16 %v934
          %v952 = vunpack.c.l.b16 %v935
          %v953 = vpack.c.b16 %v952, %v951
          %vm954 = vcmask 130048
          %v956 = vsel %vm954, %v953, 0
          %958 = vmatpush.bf16.msra.mxu0 0
          %959 = vmatpush.bf16.msra.mxu0 0
          %960 = vmatpush.bf16.msra.mxu0 0
          %961 = vmatpush.bf16.msra.mxu0 0
          %962 = vmatpush.bf16.msra.mxu0 0
          %963 = vmatpush.bf16.msra.mxu0 0
          %964 = vmatpush.bf16.msra.mxu0 0
          %965 = vmatpush.bf16.msra.mxu0 %v936
          %966 = vmatmul.bf16.gmra.mxu0 %v956
          %v967 = vpop.f32.mrf.mxu0
          %v968 = vadd.f32 %v942, %v967
          %v969 = vpop.f32.mrf.mxu0
          %v970 = vadd.f32 %v947, %v969
          %971 = vdwg.mxu0
          %v972 = vmax.f32 %v968, 0.0
          %v973 = vmax.f32 %v970, 0.0
          %v974 = vld [vmem:[%s5] sm:$0xff]
          %v975 = vld [vmem:[%s5 + $0x8] sm:$0xff]
          %v976 = vmul.f32 %v972, %v974
          %v977 = vmul.f32 %v973, %v975
          %v978 = vld [vmem:[%s6] sm:$0xf]
          %v979 = vld [vmem:[%s6 + $0x4] sm:$0xf]
          %v980 = vld [vmem:[%s6 + $0x8] sm:$0xf]
          %v981 = vld [vmem:[%s6 + $0xc] sm:$0xf]
          %v982 = vpack.c.bf16 %v977, %v976
          %v987 = vunpack.c.l.b16 %v978
          %v988 = vunpack.c.l.b16 %v979
          %v989 = vunpack.c.l.b16 %v980
          %v990 = vunpack.c.l.b16 %v981
          %v991 = vpack.c.b16 %v988, %v987
          %v992 = vpack.c.b16 %v990, %v989
          %v994 = vsel %vm954, %v991, 0
          %v997 = vsel %vm954, %v992, 0
          %999 = vmatpush.bf16.msra.mxu0 0
          %1000 = vmatpush.bf16.msra.mxu0 0
          %1001 = vmatpush.bf16.msra.mxu0 0
          %1002 = vmatpush.bf16.msra.mxu0 0
          %1003 = vmatpush.bf16.msra.mxu0 0
          %1004 = vmatpush.bf16.msra.mxu0 0
          %1005 = vmatpush.bf16.msra.mxu0 0
          %1006 = vmatpush.bf16.msra.mxu0 %v982
          %1007 = vmatmul.bf16.gmra.mxu0 %v994
          %v1008 = vpop.f32.mrf.mxu0
          %v1009 = vadd.f32 0.0, %v1008
          %v1010 = vpop.f32.mrf.mxu0
          %v1011 = vadd.f32 0.0, %v1010
          %1012 = vmatmul.bf16.gmra.mxu0 %v997
          %v1013 = vpop.f32.mrf.mxu0
          %v1014 = vadd.f32 0.0, %v1013
          %v1015 = vpop.f32.mrf.mxu0
          %v1016 = vadd.f32 0.0, %v1015
          %1017 = vdwg.mxu0
          %v1018 = vpack.c.bf16 %v1009, %v1009
          %v1019 = vpack.c.bf16 %v1011, %v1011
          %v1020 = vpack.c.bf16 %v1014, %v1014
          %v1021 = vpack.c.bf16 %v1016, %v1016
          %vm1022 = vcmask 519168
          %1023 = vst.msk [vmem:[#allocation2] sm:$0xf] %vm1022, %v1018
          %1024 = vst.msk [vmem:[#allocation2 + $0x4] sm:$0xf] %vm1022, %v1019
          %1025 = vst.msk [vmem:[#allocation2 + $0x8] sm:$0xf] %vm1022, %v1020
          %1026 = vst.msk [vmem:[#allocation2 + $0xc] sm:$0xf] %vm1022, %v1021
        $region72: #{tpu_custom_call.1} parent=55 // pred_fallthru
          _
        %s1027 = smul.u32 %s32, 512
        %s1028 = sshra.s32 %s1027, 7
        %s1029 = sand.u32 %s1027, 127
        %s1030 = smul.addr %s1028, 4
        %s1031 = scalar_lea.vmem %s354, %s1030 [#allocation3]
        %v1032 = vld [vmem:[%s1031] sm:$0xff]
        %v1033 = vld [vmem:[%s1031 + $0x8] sm:$0xff]
        %v1034 = vld [vmem:[%s1031 + $0x30] sm:$0xff]
        %v1035 = vld [vmem:[%s1031 + $0x38] sm:$0xff]
        %s1036 = smul.addr %s1028, 4
        %s1037 = scalar_lea.vmem [#allocation8], %s1036
        %v1038 = vld [vmem:[%s1037] sm:$0xff]
        %v1039 = vld [vmem:[%s1037 + $0x8] sm:$0xff]
        %v1040 = vld [vmem:[%s1037 + $0x30] sm:$0xff]
        %v1041 = vld [vmem:[%s1037 + $0x38] sm:$0xff]
        %v1042 = vld [vmem:[%s1037 + $0x60] sm:$0xff]
        %v1043 = vld [vmem:[%s1037 + $0x68] sm:$0xff]
        %v1044 = vld [vmem:[%s1037 + $0x90] sm:$0xff]
        %v1045 = vld [vmem:[%s1037 + $0x98] sm:$0xff]
        %v1046 = vld [vmem:[%s1037 + $0xc0] sm:$0xff]
        %v1047 = vld [vmem:[%s1037 + $0xc8] sm:$0xff]
        %v1048 = vld [vmem:[%s1037 + $0xf0] sm:$0xff]
        %v1049 = vld [vmem:[%s1037 + $0xf8] sm:$0xff]
        %v1050 = vld [vmem:[%s1037 + $0x120] sm:$0xff]
        %v1051 = vld [vmem:[%s1037 + $0x128] sm:$0xff]
        %v1052 = vld [vmem:[%s1037 + $0x150] sm:$0xff]
        %v1053 = vld [vmem:[%s1037 + $0x158] sm:$0xff]
        %v1054 = vld [vmem:[%s7] sm:$0xf]
        %v1055 = vld [vmem:[%s7 + $0x4] sm:$0xf]
        %v1056 = vld [vmem:[%s7 + $0x8] sm:$0xf]
        %v1057 = vld [vmem:[%s7 + $0xc] sm:$0xf]
        %v1058 = vld [vmem:[#allocation2] sm:$0xf]
        %v1059 = vld [vmem:[#allocation2 + $0x4] sm:$0xf]
        %v1060 = vld [vmem:[#allocation2 + $0x8] sm:$0xf]
        %v1061 = vld [vmem:[#allocation2 + $0xc] sm:$0xf]
        %v1066 = vunpack.c.l.b16 %v1058
        %v1067 = vunpack.c.l.b16 %v1059
        %v1068 = vunpack.c.l.b16 %v1060
        %v1069 = vunpack.c.l.b16 %v1061
        %v1070 = vpack.c.b16 %v1067, %v1066
        %v1071 = vpack.c.b16 %v1069, %v1068
        %v1088 = vunpack.c.l.b16 %v1038
        %v1089 = vunpack.c.h.b16 %v1038
        %v1090 = vunpack.c.l.b16 %v1039
        %v1091 = vunpack.c.h.b16 %v1039
        %v1092 = vunpack.c.l.b16 %v1040
        %v1093 = vunpack.c.h.b16 %v1040
        %v1094 = vunpack.c.l.b16 %v1041
        %v1095 = vunpack.c.h.b16 %v1041
        %v1096 = vunpack.c.l.b16 %v1042
        %v1097 = vunpack.c.h.b16 %v1042
        %v1098 = vunpack.c.l.b16 %v1043
        %v1099 = vunpack.c.h.b16 %v1043
        %v1100 = vunpack.c.l.b16 %v1044
        %v1101 = vunpack.c.h.b16 %v1044
        %v1102 = vunpack.c.l.b16 %v1045
        %v1103 = vunpack.c.h.b16 %v1045
        %v1104 = vunpack.c.l.b16 %v1046
        %v1105 = vunpack.c.h.b16 %v1046
        %v1106 = vunpack.c.l.b16 %v1047
        %v1107 = vunpack.c.h.b16 %v1047
        %v1108 = vunpack.c.l.b16 %v1048
        %v1109 = vunpack.c.h.b16 %v1048
        %v1110 = vunpack.c.l.b16 %v1049
        %v1111 = vunpack.c.h.b16 %v1049
        %v1112 = vunpack.c.l.b16 %v1050
        %v1113 = vunpack.c.h.b16 %v1050
        %v1114 = vunpack.c.l.b16 %v1051
        %v1115 = vunpack.c.h.b16 %v1051
        %v1116 = vunpack.c.l.b16 %v1052
        %v1117 = vunpack.c.h.b16 %v1052
        %v1118 = vunpack.c.l.b16 %v1053
        %v1119 = vunpack.c.h.b16 %v1053
        %v1120 = vpack.c.b16 %v1092, %v1088
        %v1121 = vpack.c.b16 %v1093, %v1089
        %v1122 = vpack.c.b16 %v1094, %v1090
        %v1123 = vpack.c.b16 %v1095, %v1091
        %v1124 = vpack.c.b16 %v1100, %v1096
        %v1125 = vpack.c.b16 %v1101, %v1097
        %v1126 = vpack.c.b16 %v1102, %v1098
        %v1127 = vpack.c.b16 %v1103, %v1099
        %v1128 = vpack.c.b16 %v1108, %v1104
        %v1129 = vpack.c.b16 %v1109, %v1105
        %v1130 = vpack.c.b16 %v1110, %v1106
        %v1131 = vpack.c.b16 %v1111, %v1107
        %v1132 = vpack.c.b16 %v1116, %v1112
        %v1133 = vpack.c.b16 %v1117, %v1113
        %v1134 = vpack.c.b16 %v1118, %v1114
        %v1135 = vpack.c.b16 %v1119, %v1115
        %vm1152 = vcmask 523264
        %v1154 = vsel %vm1152, %v1070, 0
        %v1157 = vsel %vm1152, %v1071, 0
        %1159 = vmatpush.bf16.msra.mxu0 0
        %1160 = vmatpush.bf16.msra.mxu0 0
        %1161 = vmatpush.bf16.msra.mxu0 0
        %1162 = vmatpush.bf16.msra.mxu0 0
        %1163 = vmatpush.bf16.msra.mxu0 %v1132
        %1164 = vmatpush.bf16.msra.mxu0 %v1128
        %1165 = vmatpush.bf16.msra.mxu0 %v1124
        %1166 = vmatpush.bf16.msra.mxu0 %v1120
        %1167 = vmatmul.bf16.gmra.mxu0 %v1154
        %v1168 = vpop.f32.mrf.mxu0
        %v1169 = vadd.f32 0.0, %v1168
        %v1170 = vpop.f32.mrf.mxu0
        %v1171 = vadd.f32 0.0, %v1170
        %1172 = vmatmul.bf16.gmra.mxu0 %v1157
        %v1173 = vpop.f32.mrf.mxu0
        %v1174 = vadd.f32 0.0, %v1173
        %v1175 = vpop.f32.mrf.mxu0
        %v1176 = vadd.f32 0.0, %v1175
        %1177 = vdwg.mxu0
        %1178 = vmatpush.bf16.msra.mxu0 0
        %1179 = vmatpush.bf16.msra.mxu0 0
        %1180 = vmatpush.bf16.msra.mxu0 0
        %1181 = vmatpush.bf16.msra.mxu0 0
        %1182 = vmatpush.bf16.msra.mxu0 %v1133
        %1183 = vmatpush.bf16.msra.mxu0 %v1129
        %1184 = vmatpush.bf16.msra.mxu0 %v1125
        %1185 = vmatpush.bf16.msra.mxu0 %v1121
        %1186 = vmatmul.bf16.gmra.mxu0 %v1154
        %v1187 = vpop.f32.mrf.mxu0
        %v1188 = vadd.f32 0.0, %v1187
        %v1189 = vpop.f32.mrf.mxu0
        %v1190 = vadd.f32 0.0, %v1189
        %1191 = vmatmul.bf16.gmra.mxu0 %v1157
        %v1192 = vpop.f32.mrf.mxu0
        %v1193 = vadd.f32 0.0, %v1192
        %v1194 = vpop.f32.mrf.mxu0
        %v1195 = vadd.f32 0.0, %v1194
        %1196 = vdwg.mxu0
        %1197 = vmatpush.bf16.msra.mxu0 0
        %1198 = vmatpush.bf16.msra.mxu0 0
        %1199 = vmatpush.bf16.msra.mxu0 0
        %1200 = vmatpush.bf16.msra.mxu0 0
        %1201 = vmatpush.bf16.msra.mxu0 %v1134
        %1202 = vmatpush.bf16.msra.mxu0 %v1130
        %1203 = vmatpush.bf16.msra.mxu0 %v1126
        %1204 = vmatpush.bf16.msra.mxu0 %v1122
        %1205 = vmatmul.bf16.gmra.mxu0 %v1154
        %v1206 = vpop.f32.mrf.mxu0
        %v1207 = vadd.f32 0.0, %v1206
        %v1208 = vpop.f32.mrf.mxu0
        %v1209 = vadd.f32 0.0, %v1208
        %1210 = vmatmul.bf16.gmra.mxu0 %v1157
        %v1211 = vpop.f32.mrf.mxu0
        %v1212 = vadd.f32 0.0, %v1211
        %v1213 = vpop.f32.mrf.mxu0
        %v1214 = vadd.f32 0.0, %v1213
        %1215 = vdwg.mxu0
        %1216 = vmatpush.bf16.msra.mxu0 0
        %1217 = vmatpush.bf16.msra.mxu0 0
        %1218 = vmatpush.bf16.msra.mxu0 0
        %1219 = vmatpush.bf16.msra.mxu0 0
        %1220 = vmatpush.bf16.msra.mxu0 %v1135
        %1221 = vmatpush.bf16.msra.mxu0 %v1131
        %1222 = vmatpush.bf16.msra.mxu0 %v1127
        %1223 = vmatpush.bf16.msra.mxu0 %v1123
        %1224 = vmatmul.bf16.gmra.mxu0 %v1154
        %v1225 = vpop.f32.mrf.mxu0
        %v1226 = vadd.f32 0.0, %v1225
        %v1227 = vpop.f32.mrf.mxu0
        %v1228 = vadd.f32 0.0, %v1227
        %1229 = vmatmul.bf16.gmra.mxu0 %v1157
        %v1230 = vpop.f32.mrf.mxu0
        %v1231 = vadd.f32 0.0, %v1230
        %v1232 = vpop.f32.mrf.mxu0
        %v1233 = vadd.f32 0.0, %v1232
        %1234 = vdwg.mxu0
        %v1239 = vunpack.c.l.b16 %v1054
        %v1240 = vunpack.c.l.b16 %v1055
        %v1241 = vunpack.c.l.b16 %v1056
        %v1242 = vunpack.c.l.b16 %v1057
        %v1243 = vpack.c.b16 %v1240, %v1239
        %v1244 = vpack.c.b16 %v1242, %v1241
        %v1249 = vunpack.c.l.b16 %v1032
        %v1250 = vunpack.c.h.b16 %v1032
        %v1251 = vunpack.c.l.b16 %v1033
        %v1252 = vunpack.c.h.b16 %v1033
        %v1253 = vunpack.c.l.b16 %v1034
        %v1254 = vunpack.c.h.b16 %v1034
        %v1255 = vunpack.c.l.b16 %v1035
        %v1256 = vunpack.c.h.b16 %v1035
        %v1257 = vpack.c.b16 %v1253, %v1249
        %v1258 = vpack.c.b16 %v1254, %v1250
        %v1259 = vpack.c.b16 %v1255, %v1251
        %v1260 = vpack.c.b16 %v1256, %v1252
        %vm1265 = vcmask 130048
        %v1267 = vsel %vm1265, %v1243, 0
        %v1270 = vsel %vm1265, %v1244, 0
        %1272 = vmatpush.bf16.msra.mxu0 0
        %1273 = vmatpush.bf16.msra.mxu0 0
        %1274 = vmatpush.bf16.msra.mxu0 0
        %1275 = vmatpush.bf16.msra.mxu0 0
        %1276 = vmatpush.bf16.msra.mxu0 0
        %1277 = vmatpush.bf16.msra.mxu0 0
        %1278 = vmatpush.bf16.msra.mxu0 0
        %1279 = vmatpush.bf16.msra.mxu0 %v1257
        %1280 = vmatmul.bf16.gmra.mxu0 %v1267
        %v1281 = vpop.f32.mrf.mxu0
        %v1282 = vadd.f32 %v1169, %v1281
        %v1283 = vpop.f32.mrf.mxu0
        %v1284 = vadd.f32 %v1171, %v1283
        %1285 = vmatmul.bf16.gmra.mxu0 %v1270
        %v1286 = vpop.f32.mrf.mxu0
        %v1287 = vadd.f32 %v1174, %v1286
        %v1288 = vpop.f32.mrf.mxu0
        %v1289 = vadd.f32 %v1176, %v1288
        %1290 = vdwg.mxu0
        %1291 = vmatpush.bf16.msra.mxu0 0
        %1292 = vmatpush.bf16.msra.mxu0 0
        %1293 = vmatpush.bf16.msra.mxu0 0
        %1294 = vmatpush.bf16.msra.mxu0 0
        %1295 = vmatpush.bf16.msra.mxu0 0
        %1296 = vmatpush.bf16.msra.mxu0 0
        %1297 = vmatpush.bf16.msra.mxu0 0
        %1298 = vmatpush.bf16.msra.mxu0 %v1258
        %1299 = vmatmul.bf16.gmra.mxu0 %v1267
        %v1300 = vpop.f32.mrf.mxu0
        %v1301 = vadd.f32 %v1188, %v1300
        %v1302 = vpop.f32.mrf.mxu0
        %v1303 = vadd.f32 %v1190, %v1302
        %1304 = vmatmul.bf16.gmra.mxu0 %v1270
        %v1305 = vpop.f32.mrf.mxu0
        %v1306 = vadd.f32 %v1193, %v1305
        %v1307 = vpop.f32.mrf.mxu0
        %v1308 = vadd.f32 %v1195, %v1307
        %1309 = vdwg.mxu0
        %1310 = vmatpush.bf16.msra.mxu0 0
        %1311 = vmatpush.bf16.msra.mxu0 0
        %1312 = vmatpush.bf16.msra.mxu0 0
        %1313 = vmatpush.bf16.msra.mxu0 0
        %1314 = vmatpush.bf16.msra.mxu0 0
        %1315 = vmatpush.bf16.msra.mxu0 0
        %1316 = vmatpush.bf16.msra.mxu0 0
        %1317 = vmatpush.bf16.msra.mxu0 %v1259
        %1318 = vmatmul.bf16.gmra.mxu0 %v1267
        %v1319 = vpop.f32.mrf.mxu0
        %v1320 = vadd.f32 %v1207, %v1319
        %v1321 = vpop.f32.mrf.mxu0
        %v1322 = vadd.f32 %v1209, %v1321
        %1323 = vmatmul.bf16.gmra.mxu0 %v1270
        %v1324 = vpop.f32.mrf.mxu0
        %v1325 = vadd.f32 %v1212, %v1324
        %v1326 = vpop.f32.mrf.mxu0
        %v1327 = vadd.f32 %v1214, %v1326
        %1328 = vdwg.mxu0
        %1329 = vmatpush.bf16.msra.mxu0 0
        %1330 = vmatpush.bf16.msra.mxu0 0
        %1331 = vmatpush.bf16.msra.mxu0 0
        %1332 = vmatpush.bf16.msra.mxu0 0
        %1333 = vmatpush.bf16.msra.mxu0 0
        %1334 = vmatpush.bf16.msra.mxu0 0
        %1335 = vmatpush.bf16.msra.mxu0 0
        %1336 = vmatpush.bf16.msra.mxu0 %v1260
        %1337 = vmatmul.bf16.gmra.mxu0 %v1267
        %v1338 = vpop.f32.mrf.mxu0
        %v1339 = vadd.f32 %v1226, %v1338
        %v1340 = vpop.f32.mrf.mxu0
        %v1341 = vadd.f32 %v1228, %v1340
        %1342 = vmatmul.bf16.gmra.mxu0 %v1270
        %v1343 = vpop.f32.mrf.mxu0
        %v1344 = vadd.f32 %v1231, %v1343
        %v1345 = vpop.f32.mrf.mxu0
        %v1346 = vadd.f32 %v1233, %v1345
        %1347 = vdwg.mxu0
        %v1348 = vld [vmem:[%s8] sm:$0xff]
        %v1349 = vld [vmem:[%s8 + $0x8] sm:$0xff]
        %v1350 = vld [vmem:[%s8 + $0x10] sm:$0xff]
        %v1351 = vld [vmem:[%s8 + $0x18] sm:$0xff]
        %1353 = vset.pattern.permute.xlu0 0
        %1354 = vperm.xlu0 %1353, %v1348
        %v1355 = vpop.permute.xlu0 %1354
        %1358 = vset.pattern.permute.xlu0 0
        %1359 = vperm.xlu0 %1358, %v1349
        %v1360 = vpop.permute.xlu0 %1359
        %1363 = vset.pattern.permute.xlu0 0
        %1364 = vperm.xlu0 %1363, %v1350
        %v1365 = vpop.permute.xlu0 %1364
        %1368 = vset.pattern.permute.xlu0 0
        %1369 = vperm.xlu0 %1368, %v1351
        %v1370 = vpop.permute.xlu0 %1369
        %v1372 = vadd.f32 %v1282, %v1355
        %v1373 = vadd.f32 %v1301, %v1355
        %v1374 = vadd.f32 %v1320, %v1355
        %v1375 = vadd.f32 %v1339, %v1355
        %v1376 = vadd.f32 %v1284, %v1360
        %v1377 = vadd.f32 %v1303, %v1360
        %v1378 = vadd.f32 %v1322, %v1360
        %v1379 = vadd.f32 %v1341, %v1360
        %v1380 = vadd.f32 %v1287, %v1365
        %v1381 = vadd.f32 %v1306, %v1365
        %v1382 = vadd.f32 %v1325, %v1365
        %v1383 = vadd.f32 %v1344, %v1365
        %v1384 = vadd.f32 %v1289, %v1370
        %v1385 = vadd.f32 %v1308, %v1370
        %v1386 = vadd.f32 %v1327, %v1370
        %v1387 = vadd.f32 %v1346, %v1370
        %v1388 = vmax.f32 %v1372, 0.0
        %v1389 = vmax.f32 %v1373, 0.0
        %v1390 = vmax.f32 %v1374, 0.0
        %v1391 = vmax.f32 %v1375, 0.0
        %v1392 = vmax.f32 %v1376, 0.0
        %v1393 = vmax.f32 %v1377, 0.0
        %v1394 = vmax.f32 %v1378, 0.0
        %v1395 = vmax.f32 %v1379, 0.0
        %v1396 = vmax.f32 %v1380, 0.0
        %v1397 = vmax.f32 %v1381, 0.0
        %v1398 = vmax.f32 %v1382, 0.0
        %v1399 = vmax.f32 %v1383, 0.0
        %v1400 = vmax.f32 %v1384, 0.0
        %v1401 = vmax.f32 %v1385, 0.0
        %v1402 = vmax.f32 %v1386, 0.0
        %v1403 = vmax.f32 %v1387, 0.0
        %1404 = vst [vmem:[%s399] sm:$0xff] %v1388
        %1405 = vst [vmem:[%s399 + $0x8] sm:$0xff] %v1389
        %1406 = vst [vmem:[%s399 + $0x10] sm:$0xff] %v1390
        %1407 = vst [vmem:[%s399 + $0x18] sm:$0xff] %v1391
        %1408 = vst [vmem:[%s399 + $0x20] sm:$0xff] %v1392
        %1409 = vst [vmem:[%s399 + $0x28] sm:$0xff] %v1393
        %1410 = vst [vmem:[%s399 + $0x30] sm:$0xff] %v1394
        %1411 = vst [vmem:[%s399 + $0x38] sm:$0xff] %v1395
        %1412 = vst [vmem:[%s399 + $0x40] sm:$0xff] %v1396
        %1413 = vst [vmem:[%s399 + $0x48] sm:$0xff] %v1397
        %1414 = vst [vmem:[%s399 + $0x50] sm:$0xff] %v1398
        %1415 = vst [vmem:[%s399 + $0x58] sm:$0xff] %v1399
        %1416 = vst [vmem:[%s399 + $0x60] sm:$0xff] %v1400
        %1417 = vst [vmem:[%s399 + $0x68] sm:$0xff] %v1401
        %1418 = vst [vmem:[%s399 + $0x70] sm:$0xff] %v1402
        %1419 = vst [vmem:[%s399 + $0x78] sm:$0xff] %v1403
        %s1420 = sand.u32 %s243, 1
        %s1421 = scalar_lea.sflag [#allocation5], %s1420
        %s1422 = sand.u32 %s243, 1
        %s1423 = smul.addr %s1422, 128
        %s1424 = scalar_lea.vmem [#allocation9], %s1423
        // Predicated region
        $region73: #{tpu_custom_call.1} parent=55 // pred_check
          %p1425 = pneg %p253
        $region74: #{tpu_custom_call.1} parent=55 // pred_check_branch
          %1427 = sbr.rel (%p1425) target = $region76
        $region75: #{tpu_custom_call.1} parent=55 // pred_region
          %s1428 = smul.u32 4, %s32
          %1430 = vsyncadd %s1421, 0
          %s1431 = smul.addr %s31, 48
          %s1432 = sadd.s32 %s1428, %s1431
          %s1433 = smul.addr %s1432, 8
          %s1434 = scalar_lea.hbm %s9, %s1433
          %s1435 = sshll.u32 %s1424, 4
          %s1436 = int_to_ptr.vmem [resolvable:$true] %s1435
          %s1437 = sshll.u32 %s1434, 4
          %s1438 = int_to_ptr.hbm [resolvable:$true] %s1437
          %1443 = dma.vmem_to_hbm [thread:$0]  %s1436, 2048, %s1438, %s1421, 512, 1536, 32
        $region76: #{tpu_custom_call.1} parent=55 // pred_fallthru
          _
      $region56: #{tpu_custom_call.1} parent=5 // pred_fallthru
        _
      %p1444 = scmp.le.s32.totalorder 2, %s22
      // Predicated region
      $region77: #{tpu_custom_call.1} parent=5 // pred_check
        %p1445 = pneg %p1444
      $region78: #{tpu_custom_call.1} parent=5 // pred_check_branch
        %1447 = sbr.rel (%p1445) target = $region80
      $region79: #{tpu_custom_call.1} parent=5 // pred_region
        %s1448 = ssub.s32 %s22, 2
        // Predicated region
        $region81: #{tpu_custom_call.1} parent=79 // pred_check
          %p1449 = pneg %p259
        $region82: #{tpu_custom_call.1} parent=79 // pred_check_branch
          %1451 = sbr.rel (%p1449) target = $region84
        $region83: #{tpu_custom_call.1} parent=79 // pred_region
          %s1452 = sand.u32 %s244, 1
          %s1453 = scalar_lea.sflag [#allocation5], %s1452
          %s1454 = sand.u32 %s244, 1
          %s1455 = smul.addr %s1454, 128
          %s1456 = scalar_lea.vmem [#allocation9], %s1455
          %1458 = dma.done %s1453, 2048
        $region84: #{tpu_custom_call.1} parent=79 // pred_fallthru
          _
      $region80: #{tpu_custom_call.1} parent=5 // pred_fallthru
        _
    $region6: #{tpu_custom_call.1} parent=1 // loop_footer
      %s26 = sadd.s32 1, %s22
    $region7: #{tpu_custom_call.1} parent=1 // loop_footer_branch
      %21 = sbr.rel target = $region3
    $region8: #{tpu_custom_call.1} parent=1 // loop_exit
      _
    %1459 = vsyncpa [#allocation4], 1
    %s1460 = scalar_lea.sflag [#allocation4], 1
    %1461 = vsyncpa %s1460, 1
    %1462 = vsyncpa [#allocation7], 1
    %1463 = vsyncpa [#allocation5], 1
    %s1464 = scalar_lea.sflag [#allocation5], 1
    %1465 = vsyncpa %s1464, 1

</llo_original>
